<compile_context>
chip_gen: v6e
topology: v6e:2x2x1
jax: 0.10.0
libtpu: 0.0.40
codegen_flags: <defaults>
</compile_context>

<pallas_src>
import functools

import jax
import jax.numpy as jnp
from jax import lax
from jax.experimental import pallas as pl
from jax.experimental.pallas import tpu as pltpu


# ----------------------------- fused Pallas kernel -----------------------------

def _encoder_kernel(ei_ref, x_ref, eattr_ref,
                    w_in_ref, b_in_ref,
                    w_ij_ref, w_e_ref, b_cat_ref,
                    w_mlp_ref, b_mlp_ref,
                    o_ref,
                    h_ref, scat_dst_ref, scat_src_ref,
                    *, hidden):
    H = hidden
    layer = pl.program_id(0)

    # ---- one-time init (layer 0): build one-hot scatter matrices + InputLayer ----
    @pl.when(layer == 0)
    def _init():
        ei = ei_ref[...]                                     # [2, E] int32
        src_row = ei[0:1, :]                                 # [1, E]
        dst_row = ei[1:2, :]                                 # [1, E]
        node_iota = lax.broadcasted_iota(jnp.int32, scat_dst_ref.shape, 0)  # [N, E]
        scat_dst_ref[...] = (node_iota == dst_row).astype(jnp.bfloat16)
        scat_src_ref[...] = (node_iota == src_row).astype(jnp.bfloat16)

        # InputLayer: Linear + ReLU (bf16 MXU, f32 accumulate + activation)
        h0 = jnp.dot(x_ref[...].astype(jnp.bfloat16),
                     w_in_ref[...].astype(jnp.bfloat16),
                     preferred_element_type=jnp.float32)
        h_ref[...] = jnp.maximum(h0 + b_in_ref[...], 0.0)    # [N, H] f32

    h = h_ref[...]                                           # [N, H] f32 (persistent)
    h_bf = h.astype(jnp.bfloat16)
    eattr_bf = eattr_ref[...].astype(jnp.bfloat16)           # [E, D]
    scat_dst = scat_dst_ref[...]                             # [N, E] bf16
    scat_src = scat_src_ref[...]                             # [N, E] bf16

    # ---- CGConv: fused gate|core projection of z = [x_dst, x_src, e] ----
    #   zW = x_dst @ W_i + x_src @ W_j + e @ W_e,   W_* = [W_f_* | W_s_*]
    # Node-side projection is ONE lane-dense [N, 4H] matmul; per-edge values are
    # recovered with one-hot contractions over the node axis (MXU).
    hW = jnp.dot(h_bf, w_ij_ref[0].astype(jnp.bfloat16),
                 preferred_element_type=jnp.float32)         # [N, 4H]
    hWi = hW[:, :2 * H].astype(jnp.bfloat16)                 # dst-section  [N, 2H]
    hWj = hW[:, 2 * H:].astype(jnp.bfloat16)                 # src-section  [N, 2H]

    eWe = jnp.dot(eattr_bf, w_e_ref[0].astype(jnp.bfloat16),
                  preferred_element_type=jnp.float32)        # [E, 2H]

    dn = (((0,), (0,)), ((), ()))                            # contract node axis
    zW = (lax.dot_general(scat_dst, hWi, dn, preferred_element_type=jnp.float32)
          + lax.dot_general(scat_src, hWj, dn, preferred_element_type=jnp.float32)
          + eWe + b_cat_ref[0])                              # [E, 2H] f32

    gate = jax.nn.sigmoid(zW[:, :H])                         # f32 (EUP)
    core = jax.nn.softplus(zW[:, H:])                        # f32 (EUP)
    msg = (gate * core).astype(jnp.bfloat16)                 # [E, H]

    # scatter-add over edges at the destination node (one-hot MXU matmul) + residual
    agg = jnp.dot(scat_dst, msg, preferred_element_type=jnp.float32)   # [N, H]
    h = h + agg

    # ---- MultiLayerPercetronLayer: Linear + ReLU ----
    h = jnp.dot(h.astype(jnp.bfloat16), w_mlp_ref[0].astype(jnp.bfloat16),
                preferred_element_type=jnp.float32) + b_mlp_ref[0]
    h = jnp.maximum(h, 0.0)

    h_ref[...] = h
    o_ref[...] = h.astype(o_ref.dtype)   # constant block index -> written back once


# ----------------------------- wrapper -----------------------------

def _padded_bytes(shape, itemsize):
    """Rough VMEM footprint of one buffer, padded to (8, 128) tiles."""
    s = list(shape)
    if not s:
        return itemsize
    s[-1] = pl.cdiv(s[-1], 128) * 128
    if len(s) >= 2:
        s[-2] = pl.cdiv(s[-2], 8) * 8
    n = 1
    for d in s:
        n *= d
    return n * itemsize


def encoder_forward(packed, x, edge_index, edge_attr):
    N, F = x.shape
    E = edge_index.shape[1]
    H = packed["w_in"].shape[1]
    L = packed["w_ij"].shape[0]

    if edge_attr.shape[1] == 0:
        # num_edge_features == 0 path: zero-width edge features contribute nothing;
        # represented as a 1-wide zero column against zero w_e rows (same math).
        edge_attr = jnp.zeros((E, 1), jnp.float32)
    De = edge_attr.shape[1]
    assert packed["w_e"].shape[1] == De, (
        f"edge-feature width mismatch: packed w_e expects {packed['w_e'].shape[1]}, "
        f"got edge_attr width {De}")

    ei = edge_index.astype(jnp.int32)                         # [2, E], lane-dense

    args = (ei, x, edge_attr,
            packed["w_in"], packed["b_in"],
            packed["w_ij"], packed["w_e"], packed["b_cat"],
            packed["w_mlp"], packed["b_mlp"])

    in_specs = [
        pl.BlockSpec((2, E), lambda l: (0, 0)),               # edge index (fetched once)
        pl.BlockSpec((N, F), lambda l: (0, 0)),               # x
        pl.BlockSpec((E, De), lambda l: (0, 0)),              # edge_attr
        pl.BlockSpec((F, H), lambda l: (0, 0)),               # w_in
        pl.BlockSpec((1, H), lambda l: (0, 0)),               # b_in
        pl.BlockSpec((1, H, 4 * H), lambda l: (l, 0, 0)),     # w_ij  (per layer)
        pl.BlockSpec((1, De, 2 * H), lambda l: (l, 0, 0)),    # w_e   (per layer)
        pl.BlockSpec((1, 1, 2 * H), lambda l: (l, 0, 0)),     # b_cat (per layer)
        pl.BlockSpec((1, H, H), lambda l: (l, 0, 0)),         # w_mlp (per layer)
        pl.BlockSpec((1, 1, H), lambda l: (l, 0, 0)),         # b_mlp (per layer)
    ]
    out_spec = pl.BlockSpec((N, H), lambda l: (0, 0))

    scratch_shapes = [
        pltpu.VMEM((N, H), jnp.float32),      # persistent node features h
        pltpu.VMEM((N, E), jnp.bfloat16),     # one-hot scatter (dst)
        pltpu.VMEM((N, E), jnp.bfloat16),     # one-hot scatter (src)
    ]

    # VMEM budget from actual buffer math (double-buffered inputs/output + scratch).
    vmem = 0
    for a, spec in zip(args, in_specs):
        vmem += 2 * _padded_bytes(spec.block_shape, a.dtype.itemsize)
    vmem += 2 * _padded_bytes((N, H), 4)                      # output
    vmem += _padded_bytes((N, H), 4) + 2 * _padded_bytes((N, E), 2)   # scratch
    vmem += 8 * 1024 * 1024                                   # headroom
    vmem = min(vmem, 64 * 1024 * 1024)                        # v7x physical ceiling

    flops = 2 * N * F * H + L * 2 * (N * H * 4 * H + E * De * 2 * H
                                     + 2 * N * E * 2 * H + N * E * H + N * H * H)
    cost = pl.CostEstimate(
        flops=int(flops),
        transcendentals=int(L * 3 * E * H),
        bytes_accessed=int(sum(a.size * a.dtype.itemsize for a in args) + N * H * 4),
    )

    kernel = functools.partial(_encoder_kernel, hidden=H)

    return pl.pallas_call(
        kernel,
        out_shape=jax.ShapeDtypeStruct((N, H), jnp.float32),
        grid=(L,),
        in_specs=in_specs,
        out_specs=out_spec,
        scratch_shapes=scratch_shapes,
        compiler_params=pltpu.CompilerParams(
            dimension_semantics=("arbitrary",),
            vmem_limit_bytes=int(vmem),
        ),
        cost_estimate=cost,
    )(*args)


# ----------------------------- parameters -----------------------------

def init_params(key, num_node_features, num_edge_features, hidden_channels, num_layers):
    H, D = hidden_channels, num_edge_features
    keys = iter(jax.random.split(key, 2 + 6 * num_layers))
    scale = 0.1

    def lin(kw, kb, fan_in, fan_out):
        return {
            "w": scale * jax.random.normal(kw, (fan_in, fan_out), jnp.float32),
            "b": scale * jax.random.normal(kb, (1, fan_out), jnp.float32),
        }

    params = {"input": lin(next(keys), next(keys), num_node_features, H), "blocks": []}
    for _ in range(num_layers):
        lf = lin(next(keys), next(keys), 2 * H + D, H)
        ls = lin(next(keys), next(keys), 2 * H + D, H)
        ffw = lin(next(keys), next(keys), H, H)
        params["blocks"].append({
            "conv": {"w_f": lf["w"], "b_f": lf["b"], "w_s": ls["w"], "b_s": ls["b"]},
            "ffw": ffw,
        })
    return params


def pack_params(params, hidden_channels, num_edge_features):
    """Pack per-block weights into stacked, kernel-friendly layout.

    Layout per layer:
      w_ij  [H, 4H]  = [ W_i_f | W_i_s | W_j_f | W_j_s ]  (dst-section | src-section)
      w_e   [max(D,1), 2H]
      b_cat [1, 2H]  = [ b_f | b_s ]
    """
    H, D = hidden_channels, num_edge_features
    w_ij, w_e, b_cat, w_mlp, b_mlp = [], [], [], [], []
    for blk in params["blocks"]:
        wcat = jnp.concatenate([blk["conv"]["w_f"], blk["conv"]["w_s"]], axis=1)  # [2H+D, 2H]
        bcat = jnp.concatenate([blk["conv"]["b_f"], blk["conv"]["b_s"]], axis=1)  # [1, 2H]
        w_i = wcat[:H]            # multiplies x_dst
        w_j = wcat[H:2 * H]       # multiplies x_src
        w_ij.append(jnp.concatenate([w_i, w_j], axis=1))                          # [H, 4H]
        w_e.append(wcat[2 * H:] if D > 0 else jnp.zeros((1, 2 * H), jnp.float32))
        b_cat.append(bcat)
        w_mlp.append(blk["ffw"]["w"])
        b_mlp.append(blk["ffw"]["b"])
    return {
        "w_in": params["input"]["w"], "b_in": params["input"]["b"],
        "w_ij": jnp.stack(w_ij), "w_e": jnp.stack(w_e), "b_cat": jnp.stack(b_cat),
        "w_mlp": jnp.stack(w_mlp), "b_mlp": jnp.stack(b_mlp),
    }


# -------------------- pure-JAX reference (sanity check) --------------------

def _ref_cgconv(x, edge_index, edge_attr, p):
    src, dst = edge_index[0], edge_index[1]
    z = jnp.concatenate([x[dst], x[src], edge_attr], axis=-1)
    msg = (jax.nn.sigmoid(z @ p["w_f"] + p["b_f"])
           * jax.nn.softplus(z @ p["w_s"] + p["b_s"]))
    agg = jax.ops.segment_sum(msg, dst, num_segments=x.shape[0])
    return x + agg


def encoder_reference(params, x, edge_index, edge_attr):
    h = jnp.maximum(x @ params["input"]["w"] + params["input"]["b"], 0.0)
    for blk in params["blocks"]:
        h = _ref_cgconv(h, edge_index, edge_attr, blk["conv"])
        h = jnp.maximum(h @ blk["ffw"]["w"] + blk["ffw"]["b"], 0.0)
    return h


# ----------------------------- main -----------------------------

if __name__ == "__main__":
    N, E = 16, 32                       # nodes, edges
    NUM_NODE_FEATURES = 8
    NUM_EDGE_FEATURES = 4
    HIDDEN_CHANNELS = 32
    NUM_LAYERS = 2

    key = jax.random.PRNGKey(0)
    kx, ke, ka, kp = jax.random.split(key, 4)
    x = jax.random.normal(kx, (N, NUM_NODE_FEATURES), jnp.float32)
    edge_index = jax.random.randint(ke, (2, E), 0, N, dtype=jnp.int32)
    edge_attr = jax.random.normal(ka, (E, NUM_EDGE_FEATURES), jnp.float32)

    params = init_params(kp, NUM_NODE_FEATURES, NUM_EDGE_FEATURES,
                         HIDDEN_CHANNELS, NUM_LAYERS)
    packed = pack_params(params, HIDDEN_CHANNELS, NUM_EDGE_FEATURES)

    out = encoder_forward(packed, x, edge_index, edge_attr)
    out = jax.block_until_ready(out)

    ref = encoder_reference(params, x, edge_index, edge_attr)
    assert out.shape == (N, HIDDEN_CHANNELS), out.shape
    # Tolerance covers bf16 MXU operands (f32 accumulation, f32 activations).
    assert jnp.allclose(out, ref, rtol=2e-2, atol=2e-2), "Pallas output mismatch vs reference"

    print("KERNEL_OK")
</pallas_src>

<mosaic_0001>
module attributes {stable_mosaic.version = 11 : i64} {
  func.func @_encoder_kernel(%arg0: i32, %arg1: memref<2x32xi32, #tpu.memory_space<vmem>>, %arg2: memref<16x8xf32, #tpu.memory_space<vmem>>, %arg3: memref<32x4xf32, #tpu.memory_space<vmem>>, %arg4: memref<8x32xf32, #tpu.memory_space<vmem>>, %arg5: memref<1x32xf32, #tpu.memory_space<vmem>>, %arg6: memref<1x32x128xf32, #tpu.memory_space<vmem>>, %arg7: memref<1x4x64xf32, #tpu.memory_space<vmem>>, %arg8: memref<1x1x64xf32, #tpu.memory_space<vmem>>, %arg9: memref<1x32x32xf32, #tpu.memory_space<vmem>>, %arg10: memref<1x1x32xf32, #tpu.memory_space<vmem>>, %arg11: memref<16x32xf32, #tpu.memory_space<vmem>>, %arg12: memref<16x32xf32, #tpu.memory_space<vmem>>, %arg13: memref<16x32xbf16, #tpu.memory_space<vmem>>, %arg14: memref<16x32xbf16, #tpu.memory_space<vmem>>) attributes {dimension_semantics = [#tpu.dimension_semantics<arbitrary>], iteration_bounds = array<i64: 2>, scalar_prefetch = 0 : i64, scratch_operands = 3 : i64, tpu.core_type = #tpu.core_type<tc>, window_params = [{pipeline_mode = #tpu.pipeline_mode<synchronous>, transform_indices = @transform_0, window_bounds = array<i64: 2, 32>}, {pipeline_mode = #tpu.pipeline_mode<synchronous>, transform_indices = @transform_1, window_bounds = array<i64: 16, 8>}, {pipeline_mode = #tpu.pipeline_mode<synchronous>, transform_indices = @transform_2, window_bounds = array<i64: 32, 4>}, {pipeline_mode = #tpu.pipeline_mode<synchronous>, transform_indices = @transform_3, window_bounds = array<i64: 8, 32>}, {pipeline_mode = #tpu.pipeline_mode<synchronous>, transform_indices = @transform_4, window_bounds = array<i64: 1, 32>}, {transform_indices = @transform_5, window_bounds = array<i64: 1, 32, 128>}, {transform_indices = @transform_6, window_bounds = array<i64: 1, 4, 64>}, {transform_indices = @transform_7, window_bounds = array<i64: 1, 1, 64>}, {transform_indices = @transform_8, window_bounds = array<i64: 1, 32, 32>}, {transform_indices = @transform_9, window_bounds = array<i64: 1, 1, 32>}, {pipeline_mode = #tpu.pipeline_mode<synchronous>, transform_indices = @transform_10, window_bounds = array<i64: 16, 32>}]} {
    %c0_i32 = arith.constant 0 : i32
    %0 = arith.cmpi eq, %arg0, %c0_i32 : i32
    %1 = arith.extui %0 : i1 to i32
    %c0_i32_0 = arith.constant 0 : i32
    %2 = arith.cmpi ne, %1, %c0_i32_0 : i32
    scf.if %2 {
      %c0_36 = arith.constant 0 : index
      %c0_37 = arith.constant 0 : index
      %67 = vector.load %arg1[%c0_36, %c0_37] : memref<2x32xi32, #tpu.memory_space<vmem>>, vector<2x32xi32>
      %68 = vector.extract_strided_slice %67 {offsets = [0, 0], sizes = [1, 32], strides = [1, 1]} : vector<2x32xi32> to vector<1x32xi32>
      %69 = vector.extract_strided_slice %67 {offsets = [1, 0], sizes = [1, 32], strides = [1, 1]} : vector<2x32xi32> to vector<1x32xi32>
      %70 = tpu.iota {dimensions = array<i32: 0>} : vector<16x32xi32>
      %71 = vector.broadcast %69 : vector<1x32xi32> to vector<16x32xi32>
      %72 = arith.cmpi eq, %70, %71 : vector<16x32xi32>
      %73 = arith.extui %72 : vector<16x32xi1> to vector<16x32xi32>
      %74 = arith.sitofp %73 : vector<16x32xi32> to vector<16x32xf32>
      %75 = arith.truncf %74 : vector<16x32xf32> to vector<16x32xbf16>
      %c0_38 = arith.constant 0 : index
      %c0_39 = arith.constant 0 : index
      %76 = vector.load %arg13[%c0_38, %c0_39] : memref<16x32xbf16, #tpu.memory_space<vmem>>, vector<16x32xbf16>
      tpu.vector_store %arg13[%c0_38, %c0_39], %75 {strides = array<i32>} : memref<16x32xbf16, #tpu.memory_space<vmem>>, vector<16x32xbf16>,
      %77 = vector.broadcast %68 : vector<1x32xi32> to vector<16x32xi32>
      %78 = arith.cmpi eq, %70, %77 : vector<16x32xi32>
      %79 = arith.extui %78 : vector<16x32xi1> to vector<16x32xi32>
      %80 = arith.sitofp %79 : vector<16x32xi32> to vector<16x32xf32>
      %81 = arith.truncf %80 : vector<16x32xf32> to vector<16x32xbf16>
      %c0_40 = arith.constant 0 : index
      %c0_41 = arith.constant 0 : index
      %82 = vector.load %arg14[%c0_40, %c0_41] : memref<16x32xbf16, #tpu.memory_space<vmem>>, vector<16x32xbf16>
      tpu.vector_store %arg14[%c0_40, %c0_41], %81 {strides = array<i32>} : memref<16x32xbf16, #tpu.memory_space<vmem>>, vector<16x32xbf16>,
      %c0_42 = arith.constant 0 : index
      %c0_43 = arith.constant 0 : index
      %83 = vector.load %arg2[%c0_42, %c0_43] : memref<16x8xf32, #tpu.memory_space<vmem>>, vector<16x8xf32>
      %84 = arith.truncf %83 : vector<16x8xf32> to vector<16x8xbf16>
      %c0_44 = arith.constant 0 : index
      %c0_45 = arith.constant 0 : index
      %85 = vector.load %arg4[%c0_44, %c0_45] : memref<8x32xf32, #tpu.memory_space<vmem>>, vector<8x32xf32>
      %86 = arith.truncf %85 : vector<8x32xf32> to vector<8x32xbf16>
      %cst_46 = arith.constant dense<0.000000e+00> : vector<16x32xf32>
      %87 = tpu.matmul %84, %86, %cst_46 {dimension_numbers = #tpu.dot_dimension_numbers<[1], [0], [0], [1], [0, 0, 1, 1], [], []>} : vector<16x8xbf16>, vector<8x32xbf16>, vector<16x32xf32> -> vector<16x32xf32>
      %c0_47 = arith.constant 0 : index
      %c0_48 = arith.constant 0 : index
      %88 = vector.load %arg5[%c0_47, %c0_48] : memref<1x32xf32, #tpu.memory_space<vmem>>, vector<1x32xf32>
      %89 = vector.broadcast %88 : vector<1x32xf32> to vector<16x32xf32>
      %90 = arith.addf %87, %89 : vector<16x32xf32>
      %cst_49 = arith.constant 0.000000e+00 : f32
      %91 = vector.broadcast %cst_49 : f32 to vector<16x32xf32>
      %92 = arith.maximumf %90, %91 : vector<16x32xf32>
      %c0_50 = arith.constant 0 : index
      %c0_51 = arith.constant 0 : index
      %93 = vector.load %arg12[%c0_50, %c0_51] : memref<16x32xf32, #tpu.memory_space<vmem>>, vector<16x32xf32>
      tpu.vector_store %arg12[%c0_50, %c0_51], %92 {strides = array<i32>} : memref<16x32xf32, #tpu.memory_space<vmem>>, vector<16x32xf32>,
    } else {
    }
    %c0 = arith.constant 0 : index
    %c0_1 = arith.constant 0 : index
    %3 = vector.load %arg12[%c0, %c0_1] : memref<16x32xf32, #tpu.memory_space<vmem>>, vector<16x32xf32>
    %4 = arith.truncf %3 : vector<16x32xf32> to vector<16x32xbf16>
    %c0_2 = arith.constant 0 : index
    %c0_3 = arith.constant 0 : index
    %5 = vector.load %arg3[%c0_2, %c0_3] : memref<32x4xf32, #tpu.memory_space<vmem>>, vector<32x4xf32>
    %6 = arith.truncf %5 : vector<32x4xf32> to vector<32x4xbf16>
    %c0_4 = arith.constant 0 : index
    %c0_5 = arith.constant 0 : index
    %7 = vector.load %arg13[%c0_4, %c0_5] : memref<16x32xbf16, #tpu.memory_space<vmem>>, vector<16x32xbf16>
    %c0_6 = arith.constant 0 : index
    %c0_7 = arith.constant 0 : index
    %8 = vector.load %arg14[%c0_6, %c0_7] : memref<16x32xbf16, #tpu.memory_space<vmem>>, vector<16x32xbf16>
    %c0_8 = arith.constant 0 : index
    %c0_9 = arith.constant 0 : index
    %c0_10 = arith.constant 0 : index
    %9 = vector.load %arg6[%c0_8, %c0_9, %c0_10] : memref<1x32x128xf32, #tpu.memory_space<vmem>>, vector<1x32x128xf32>
    %10 = vector.shape_cast %9 : vector<1x32x128xf32> to vector<32x128xf32>
    %11 = arith.truncf %10 : vector<32x128xf32> to vector<32x128xbf16>
    %cst = arith.constant dense<0.000000e+00> : vector<16x128xf32>
    %12 = tpu.matmul %4, %11, %cst {dimension_numbers = #tpu.dot_dimension_numbers<[1], [0], [0], [1], [0, 0, 1, 1], [], []>} : vector<16x32xbf16>, vector<32x128xbf16>, vector<16x128xf32> -> vector<16x128xf32>
    %13 = vector.extract_strided_slice %12 {offsets = [0, 0], sizes = [16, 64], strides = [1, 1]} : vector<16x128xf32> to vector<16x64xf32>
    %14 = arith.truncf %13 : vector<16x64xf32> to vector<16x64xbf16>
    %15 = vector.extract_strided_slice %12 {offsets = [0, 64], sizes = [16, 64], strides = [1, 1]} : vector<16x128xf32> to vector<16x64xf32>
    %16 = arith.truncf %15 : vector<16x64xf32> to vector<16x64xbf16>
    %c0_11 = arith.constant 0 : index
    %c0_12 = arith.constant 0 : index
    %c0_13 = arith.constant 0 : index
    %17 = vector.load %arg7[%c0_11, %c0_12, %c0_13] : memref<1x4x64xf32, #tpu.memory_space<vmem>>, vector<1x4x64xf32>
    %18 = vector.shape_cast %17 : vector<1x4x64xf32> to vector<4x64xf32>
    %19 = arith.truncf %18 : vector<4x64xf32> to vector<4x64xbf16>
    %cst_14 = arith.constant dense<0.000000e+00> : vector<32x64xf32>
    %20 = tpu.matmul %6, %19, %cst_14 {dimension_numbers = #tpu.dot_dimension_numbers<[1], [0], [0], [1], [0, 0, 1, 1], [], []>} : vector<32x4xbf16>, vector<4x64xbf16>, vector<32x64xf32> -> vector<32x64xf32>
    %cst_15 = arith.constant dense<0.000000e+00> : vector<32x64xf32>
    %21 = tpu.matmul %7, %14, %cst_15 {dimension_numbers = #tpu.dot_dimension_numbers<[0], [0], [1], [1], [0, 1, 1, 1], [], []>} : vector<16x32xbf16>, vector<16x64xbf16>, vector<32x64xf32> -> vector<32x64xf32>
    %cst_16 = arith.constant dense<0.000000e+00> : vector<32x64xf32>
    %22 = tpu.matmul %8, %16, %cst_16 {dimension_numbers = #tpu.dot_dimension_numbers<[0], [0], [1], [1], [0, 1, 1, 1], [], []>} : vector<16x32xbf16>, vector<16x64xbf16>, vector<32x64xf32> -> vector<32x64xf32>
    %23 = arith.addf %21, %22 : vector<32x64xf32>
    %24 = arith.addf %23, %20 : vector<32x64xf32>
    %c0_17 = arith.constant 0 : index
    %c0_18 = arith.constant 0 : index
    %c0_19 = arith.constant 0 : index
    %25 = vector.load %arg8[%c0_17, %c0_18, %c0_19] : memref<1x1x64xf32, #tpu.memory_space<vmem>>, vector<1x1x64xf32>
    %26 = vector.shape_cast %25 : vector<1x1x64xf32> to vector<1x64xf32>
    %27 = vector.broadcast %26 : vector<1x64xf32> to vector<32x64xf32>
    %28 = arith.addf %24, %27 : vector<32x64xf32>
    %29 = vector.extract_strided_slice %28 {offsets = [0, 0], sizes = [32, 32], strides = [1, 1]} : vector<32x64xf32> to vector<32x32xf32>
    %30 = arith.negf %29 : vector<32x32xf32>
    %31 = math.exp %30 : vector<32x32xf32>
    %cst_20 = arith.constant 1.000000e+00 : f32
    %32 = vector.broadcast %cst_20 : f32 to vector<32x32xf32>
    %33 = arith.addf %32, %31 : vector<32x32xf32>
    %34 = arith.divf %32, %33 : vector<32x32xf32>
    %35 = vector.extract_strided_slice %28 {offsets = [0, 32], sizes = [32, 32], strides = [1, 1]} : vector<32x64xf32> to vector<32x32xf32>
    %cst_21 = arith.constant 0.000000e+00 : f32
    %36 = vector.broadcast %cst_21 : f32 to vector<32x32xf32>
    %37 = arith.maximumf %35, %36 : vector<32x32xf32>
    %38 = vector.broadcast %cst_21 : f32 to vector<32x32xf32>
    %39 = arith.subf %35, %38 : vector<32x32xf32>
    %40 = arith.cmpf one, %39, %39 : vector<32x32xf32>
    %41 = vector.broadcast %cst_21 : f32 to vector<32x32xf32>
    %42 = arith.addf %35, %41 : vector<32x32xf32>
    %43 = math.absf %39 : vector<32x32xf32>
    %cst_22 = arith.constant 0.000000e+00 : f32
    %44 = vector.broadcast %cst_22 : f32 to vector<32x32xf32>
    %45 = arith.subf %44, %43 : vector<32x32xf32>
    %46 = math.exp %45 : vector<32x32xf32>
    %47 = math.log1p %46 : vector<32x32xf32>
    %48 = arith.addf %37, %47 : vector<32x32xf32>
    %49 = arith.select %40, %42, %48 : vector<32x32xi1>, vector<32x32xf32>
    %50 = arith.mulf %34, %49 : vector<32x32xf32>
    %51 = arith.truncf %50 : vector<32x32xf32> to vector<32x32xbf16>
    %cst_23 = arith.constant dense<0.000000e+00> : vector<16x32xf32>
    %52 = tpu.matmul %7, %51, %cst_23 {dimension_numbers = #tpu.dot_dimension_numbers<[1], [0], [0], [1], [0, 0, 1, 1], [], []>} : vector<16x32xbf16>, vector<32x32xbf16>, vector<16x32xf32> -> vector<16x32xf32>
    %53 = arith.addf %3, %52 : vector<16x32xf32>
    %54 = arith.truncf %53 : vector<16x32xf32> to vector<16x32xbf16>
    %c0_24 = arith.constant 0 : index
    %c0_25 = arith.constant 0 : index
    %c0_26 = arith.constant 0 : index
    %55 = vector.load %arg9[%c0_24, %c0_25, %c0_26] : memref<1x32x32xf32, #tpu.memory_space<vmem>>, vector<1x32x32xf32>
    %56 = vector.shape_cast %55 : vector<1x32x32xf32> to vector<32x32xf32>
    %57 = arith.truncf %56 : vector<32x32xf32> to vector<32x32xbf16>
    %cst_27 = arith.constant dense<0.000000e+00> : vector<16x32xf32>
    %58 = tpu.matmul %54, %57, %cst_27 {dimension_numbers = #tpu.dot_dimension_numbers<[1], [0], [0], [1], [0, 0, 1, 1], [], []>} : vector<16x32xbf16>, vector<32x32xbf16>, vector<16x32xf32> -> vector<16x32xf32>
    %c0_28 = arith.constant 0 : index
    %c0_29 = arith.constant 0 : index
    %c0_30 = arith.constant 0 : index
    %59 = vector.load %arg10[%c0_28, %c0_29, %c0_30] : memref<1x1x32xf32, #tpu.memory_space<vmem>>, vector<1x1x32xf32>
    %60 = vector.shape_cast %59 : vector<1x1x32xf32> to vector<1x32xf32>
    %61 = vector.broadcast %60 : vector<1x32xf32> to vector<16x32xf32>
    %62 = arith.addf %58, %61 : vector<16x32xf32>
    %cst_31 = arith.constant 0.000000e+00 : f32
    %63 = vector.broadcast %cst_31 : f32 to vector<16x32xf32>
    %64 = arith.maximumf %62, %63 : vector<16x32xf32>
    %c0_32 = arith.constant 0 : index
    %c0_33 = arith.constant 0 : index
    %65 = vector.load %arg12[%c0_32, %c0_33] : memref<16x32xf32, #tpu.memory_space<vmem>>, vector<16x32xf32>
    tpu.vector_store %arg12[%c0_32, %c0_33], %64 {strides = array<i32>} : memref<16x32xf32, #tpu.memory_space<vmem>>, vector<16x32xf32>,
    %c0_34 = arith.constant 0 : index
    %c0_35 = arith.constant 0 : index
    %66 = vector.load %arg11[%c0_34, %c0_35] : memref<16x32xf32, #tpu.memory_space<vmem>>, vector<16x32xf32>
    tpu.vector_store %arg11[%c0_34, %c0_35], %64 {strides = array<i32>} : memref<16x32xf32, #tpu.memory_space<vmem>>, vector<16x32xf32>,
    return
  }
  func.func @transform_0(%arg0: i32) -> (i32, i32) {
    %c0_i32 = arith.constant 0 : i32
    %c0_i32_0 = arith.constant 0 : i32
    %c0_i32_1 = arith.constant 0 : i32
    return %c0_i32, %c0_i32_0 : i32, i32
  }
  func.func @transform_1(%arg0: i32) -> (i32, i32) {
    %c0_i32 = arith.constant 0 : i32
    %c0_i32_0 = arith.constant 0 : i32
    %c0_i32_1 = arith.constant 0 : i32
    return %c0_i32, %c0_i32_0 : i32, i32
  }
  func.func @transform_2(%arg0: i32) -> (i32, i32) {
    %c0_i32 = arith.constant 0 : i32
    %c0_i32_0 = arith.constant 0 : i32
    %c0_i32_1 = arith.constant 0 : i32
    return %c0_i32, %c0_i32_0 : i32, i32
  }
  func.func @transform_3(%arg0: i32) -> (i32, i32) {
    %c0_i32 = arith.constant 0 : i32
    %c0_i32_0 = arith.constant 0 : i32
    %c0_i32_1 = arith.constant 0 : i32
    return %c0_i32, %c0_i32_0 : i32, i32
  }
  func.func @transform_4(%arg0: i32) -> (i32, i32) {
    %c0_i32 = arith.constant 0 : i32
    %c0_i32_0 = arith.constant 0 : i32
    %c0_i32_1 = arith.constant 0 : i32
    return %c0_i32, %c0_i32_0 : i32, i32
  }
  func.func @transform_5(%arg0: i32) -> (i32, i32, i32) {
    %c0_i32 = arith.constant 0 : i32
    %c0_i32_0 = arith.constant 0 : i32
    %c0_i32_1 = arith.constant 0 : i32
    return %arg0, %c0_i32, %c0_i32_0 : i32, i32, i32
  }
  func.func @transform_6(%arg0: i32) -> (i32, i32, i32) {
    %c0_i32 = arith.constant 0 : i32
    %c0_i32_0 = arith.constant 0 : i32
    %c0_i32_1 = arith.constant 0 : i32
    return %arg0, %c0_i32, %c0_i32_0 : i32, i32, i32
  }
  func.func @transform_7(%arg0: i32) -> (i32, i32, i32) {
    %c0_i32 = arith.constant 0 : i32
    %c0_i32_0 = arith.constant 0 : i32
    %c0_i32_1 = arith.constant 0 : i32
    return %arg0, %c0_i32, %c0_i32_0 : i32, i32, i32
  }
  func.func @transform_8(%arg0: i32) -> (i32, i32, i32) {
    %c0_i32 = arith.constant 0 : i32
    %c0_i32_0 = arith.constant 0 : i32
    %c0_i32_1 = arith.constant 0 : i32
    return %arg0, %c0_i32, %c0_i32_0 : i32, i32, i32
  }
  func.func @transform_9(%arg0: i32) -> (i32, i32, i32) {
    %c0_i32 = arith.constant 0 : i32
    %c0_i32_0 = arith.constant 0 : i32
    %c0_i32_1 = arith.constant 0 : i32
    return %arg0, %c0_i32, %c0_i32_0 : i32, i32, i32
  }
  func.func @transform_10(%arg0: i32) -> (i32, i32) {
    %c0_i32 = arith.constant 0 : i32
    %c0_i32_0 = arith.constant 0 : i32
    %c0_i32_1 = arith.constant 0 : i32
    return %c0_i32, %c0_i32_0 : i32, i32
  }
}

</mosaic_0001>

<llo_original>
// kernel: tpu_custom_call.1
$region0: #{tpu_custom_call.1}
  #allocation0 [shape = 'u32[]', space=smem, size = 0x4, offset = 0x4, fixed_abs, tag = 'smem constant byte address 0x4 - core index']
  #allocation1 [shape = 'u32[144,128]{1,0:T(1,128)}', space=vmem, size = 0x12000, scoped, tag = 'internal scratch']
  #allocation2 [shape = 'f32[16,32]{1,0:T(8,128)}', space=vmem, size = 0x2000, scoped, tag = 'scratch operand']
  #allocation3 [shape = 'bf16[16,32]{1,0:T(8,128)(2,1)}', space=vmem, size = 0x1000, scoped, tag = 'scratch operand']
  #allocation4 [shape = 'bf16[16,32]{1,0:T(8,128)(2,1)}', space=vmem, size = 0x1000, scoped, tag = 'scratch operand']
  %s0 = inlined_call_operand.vmem [shape: s32[2,32], index: 0, kind: input, shape index: {}]
  %s1 = inlined_call_operand.vmem [shape: f32[16,8], index: 1, kind: input, shape index: {}]
  %s2 = inlined_call_operand.vmem [shape: f32[32,4], index: 2, kind: input, shape index: {}]
  %s3 = inlined_call_operand.hbm [shape: f32[8,32], index: 3, kind: input, shape index: {}]
  %s4 = inlined_call_operand.hbm [shape: f32[1,32], index: 4, kind: input, shape index: {}]
  %s5 = inlined_call_operand.vmem [shape: f32[2,32,128], index: 5, kind: input, shape index: {}]
  %s6 = inlined_call_operand.hbm [shape: f32[2,4,64], index: 6, kind: input, shape index: {}]
  %s7 = inlined_call_operand.vmem [shape: f32[2,1,64], index: 7, kind: input, shape index: {}]
  %s8 = inlined_call_operand.hbm [shape: f32[2,32,32], index: 8, kind: input, shape index: {}]
  %s9 = inlined_call_operand.vmem [shape: f32[2,1,32], index: 9, kind: input, shape index: {}]
  %s10 = inlined_call_operand.hbm [shape: f32[16,32], index: 10, kind: output, shape index: {}]
  %s11 = sld [smem:[#allocation0]]
  $region93: #{tpu_custom_call.1} parent=0
    _
  %s13 = ssub.s32 1, %s11
  %s14 = scalar_select 0, %s13, %s11
  $region1: #{tpu_custom_call.1} parent=0
    #allocation5 [shape = 'u8[4096]{0}', space=vmem, size = 0x1000, scoped, tag = 'input window, operand 3, single buffered']
    #allocation6 [shape = 's32[2]{0}', space=sflag, size = 0x8, scoped, tag = 'scoped memory for tpu_custom_call.1']
    #allocation7 [shape = 's32[2]{0}', space=sflag, size = 0x8, scoped, tag = 'scoped memory for tpu_custom_call.1']
    #allocation8 [shape = 'u8[512]{0}', space=vmem, size = 0x400, scoped, tag = 'input window, operand 4, single buffered']
    #allocation9 [shape = 's32[1]{0}', space=sflag, size = 0x4, scoped, tag = 'scoped memory for tpu_custom_call.1']
    #allocation10 [shape = 'u8[4096]{0}', space=vmem, size = 0x1000, scoped, tag = 'input window, operand 6']
    #allocation11 [shape = 'u8[32768]{0}', space=vmem, size = 0x8000, scoped, tag = 'input window, operand 8']
    #allocation12 [shape = 'u8[8192]{0}', space=vmem, size = 0x2000, scoped, tag = 'output window, operand 0, single buffered']
    %15 = vsyncpa [#allocation6], 0
    %16 = vsyncpa [#allocation9], 0
    %17 = vsyncpa [#allocation7], 0
    loop: start=0, step=1, limit=4
    $region2: #{tpu_custom_call.1} parent=1 // loop_pre_header
      _
    $region3: #{tpu_custom_call.1} parent=1 // loop_header
      %s19 = sphi 0, %s23
      %p20 = scmp.ge.s32.totalorder %s19, 4
      %s27 = sphi 0, %s27
      %s29 = sphi 0, %s27
      %s30 = sphi 0, %s29
      %s44 = sphi 0, %s30
      %s48 = sphi 0, %s48
      %s50 = sphi 0, %s48
      %s51 = sphi 0, %s50
      %s65 = sphi 0, %s51
      %s69 = sphi 0, %s69
      %s71 = sphi 0, %s69
      %s72 = sphi 0, %s71
      %s86 = sphi 0, %s72
      %s90 = sphi 0, %s90
      %s92 = sphi 0, %s90
      %s93 = sphi 0, %s92
      %s107 = sphi 0, %s93
      %s111 = sphi 0, %s111
      %s113 = sphi 0, %s111
      %s114 = sphi 0, %s113
      %s128 = sphi 0, %s114
      %s134 = sphi 0, %s136
      %s137 = sphi 0, %s134
      %s138 = sphi 0, %s137
      %s154 = sphi 0, %s138
      %s160 = sphi 0, %s162
      %s163 = sphi 0, %s160
      %s164 = sphi 0, %s163
      %s180 = sphi 0, %s164
      %s186 = sphi 0, %s188
      %s189 = sphi 0, %s186
      %s190 = sphi 0, %s189
      %s206 = sphi 0, %s190
      %s212 = sphi 0, %s214
      %s215 = sphi 0, %s212
      %s216 = sphi 0, %s215
      %s232 = sphi 0, %s216
      %s238 = sphi 0, %s240
      %s241 = sphi 0, %s238
      %s242 = sphi 0, %s241
      %s258 = sphi 0, %s242
      %s262 = sphi 0, %s262
      %s264 = sphi 0, %s262
      %s265 = sphi 0, %s264
      %s279 = sphi 0, %s265
    $region4: #{tpu_custom_call.1} parent=1 // loop_header_branch
      %22 = sbr.rel (%p20) target = $region8
    $region5: #{tpu_custom_call.1} parent=1 // loop_body
      %s24 = ssub.s32 %s19, 1
      %s25 = ssub.s32 %s19, 2
      %s26 = sadd.s32 %s19, 1
      %s28 = sadd.s32 %s27, 1
      %p31 = scmp.eq.s32.totalorder %s19, 1
      %p32 = scmp.ne.s32.totalorder %s27, %s29
      %p33 = scmp.eq.s32.totalorder %s19, 0
      %p34 = por %p32, %p33
      %p35 = scmp.ne.s32.totalorder %s27, %s29
      %p36 = scmp.eq.s32.totalorder %s24, 1
      %p37 = por %p35, %p36
      %p38 = scmp.ne.s32.totalorder %s29, %s30
      %p39 = scmp.eq.s32.totalorder %s24, 0
      %p40 = por %p38, %p39
      %p41 = scmp.ne.s32.totalorder %s29, %s30
      %p42 = scmp.eq.s32.totalorder %s25, 1
      %p43 = por %p41, %p42
      %p45 = scmp.ne.s32.totalorder %s30, %s44
      %p46 = scmp.eq.s32.totalorder %s25, 0
      %p47 = por %p45, %p46
      %s49 = sadd.s32 %s48, 1
      %p52 = scmp.eq.s32.totalorder %s19, 1
      %p53 = scmp.ne.s32.totalorder %s48, %s50
      %p54 = scmp.eq.s32.totalorder %s19, 0
      %p55 = por %p53, %p54
      %p56 = scmp.ne.s32.totalorder %s48, %s50
      %p57 = scmp.eq.s32.totalorder %s24, 1
      %p58 = por %p56, %p57
      %p59 = scmp.ne.s32.totalorder %s50, %s51
      %p60 = scmp.eq.s32.totalorder %s24, 0
      %p61 = por %p59, %p60
      %p62 = scmp.ne.s32.totalorder %s50, %s51
      %p63 = scmp.eq.s32.totalorder %s25, 1
      %p64 = por %p62, %p63
      %p66 = scmp.ne.s32.totalorder %s51, %s65
      %p67 = scmp.eq.s32.totalorder %s25, 0
      %p68 = por %p66, %p67
      %s70 = sadd.s32 %s69, 1
      %p73 = scmp.eq.s32.totalorder %s19, 1
      %p74 = scmp.ne.s32.totalorder %s69, %s71
      %p75 = scmp.eq.s32.totalorder %s19, 0
      %p76 = por %p74, %p75
      %p77 = scmp.ne.s32.totalorder %s69, %s71
      %p78 = scmp.eq.s32.totalorder %s24, 1
      %p79 = por %p77, %p78
      %p80 = scmp.ne.s32.totalorder %s71, %s72
      %p81 = scmp.eq.s32.totalorder %s24, 0
      %p82 = por %p80, %p81
      %p83 = scmp.ne.s32.totalorder %s71, %s72
      %p84 = scmp.eq.s32.totalorder %s25, 1
      %p85 = por %p83, %p84
      %p87 = scmp.ne.s32.totalorder %s72, %s86
      %p88 = scmp.eq.s32.totalorder %s25, 0
      %p89 = por %p87, %p88
      %s91 = sadd.s32 %s90, 1
      %p94 = scmp.eq.s32.totalorder %s19, 1
      %p95 = scmp.ne.s32.totalorder %s90, %s92
      %p96 = scmp.eq.s32.totalorder %s19, 0
      %p97 = por %p95, %p96
      %p98 = scmp.ne.s32.totalorder %s90, %s92
      %p99 = scmp.eq.s32.totalorder %s24, 1
      %p100 = por %p98, %p99
      %p101 = scmp.ne.s32.totalorder %s92, %s93
      %p102 = scmp.eq.s32.totalorder %s24, 0
      %p103 = por %p101, %p102
      %p104 = scmp.ne.s32.totalorder %s92, %s93
      %p105 = scmp.eq.s32.totalorder %s25, 1
      %p106 = por %p104, %p105
      %p108 = scmp.ne.s32.totalorder %s93, %s107
      %p109 = scmp.eq.s32.totalorder %s25, 0
      %p110 = por %p108, %p109
      %s112 = sadd.s32 %s111, 1
      %p115 = scmp.eq.s32.totalorder %s19, 1
      %p116 = scmp.ne.s32.totalorder %s111, %s113
      %p117 = scmp.eq.s32.totalorder %s19, 0
      %p118 = por %p116, %p117
      %p119 = scmp.ne.s32.totalorder %s111, %s113
      %p120 = scmp.eq.s32.totalorder %s24, 1
      %p121 = por %p119, %p120
      %p122 = scmp.ne.s32.totalorder %s113, %s114
      %p123 = scmp.eq.s32.totalorder %s24, 0
      %p124 = por %p122, %p123
      %p125 = scmp.ne.s32.totalorder %s113, %s114
      %p126 = scmp.eq.s32.totalorder %s25, 1
      %p127 = por %p125, %p126
      %p129 = scmp.ne.s32.totalorder %s114, %s128
      %p130 = scmp.eq.s32.totalorder %s25, 0
      %p131 = por %p129, %p130
      %s132 = ssub.s32 %s19, %s26
      %p133 = scmp.eq.s32.totalorder %s132, 0
      %s135 = sadd.s32 %s134, 1
      %s136 = scalar_select %p133, %s134, %s135
      %p139 = pneg %p133
      %p140 = scmp.eq.s32.totalorder %s19, 1
      %p141 = por %p139, %p140
      %p142 = scmp.ne.s32.totalorder %s134, %s137
      %p143 = scmp.eq.s32.totalorder %s19, 0
      %p144 = por %p142, %p143
      %p145 = scmp.ne.s32.totalorder %s134, %s137
      %p146 = scmp.eq.s32.totalorder %s24, 1
      %p147 = por %p145, %p146
      %p148 = scmp.ne.s32.totalorder %s137, %s138
      %p149 = scmp.eq.s32.totalorder %s24, 0
      %p150 = por %p148, %p149
      %p151 = scmp.ne.s32.totalorder %s137, %s138
      %p152 = scmp.eq.s32.totalorder %s25, 1
      %p153 = por %p151, %p152
      %p155 = scmp.ne.s32.totalorder %s138, %s154
      %p156 = scmp.eq.s32.totalorder %s25, 0
      %p157 = por %p155, %p156
      %s158 = ssub.s32 %s19, %s26
      %p159 = scmp.eq.s32.totalorder %s158, 0
      %s161 = sadd.s32 %s160, 1
      %s162 = scalar_select %p159, %s160, %s161
      %p165 = pneg %p159
      %p166 = scmp.eq.s32.totalorder %s19, 1
      %p167 = por %p165, %p166
      %p168 = scmp.ne.s32.totalorder %s160, %s163
      %p169 = scmp.eq.s32.totalorder %s19, 0
      %p170 = por %p168, %p169
      %p171 = scmp.ne.s32.totalorder %s160, %s163
      %p172 = scmp.eq.s32.totalorder %s24, 1
      %p173 = por %p171, %p172
      %p174 = scmp.ne.s32.totalorder %s163, %s164
      %p175 = scmp.eq.s32.totalorder %s24, 0
      %p176 = por %p174, %p175
      %p177 = scmp.ne.s32.totalorder %s163, %s164
      %p178 = scmp.eq.s32.totalorder %s25, 1
      %p179 = por %p177, %p178
      %p181 = scmp.ne.s32.totalorder %s164, %s180
      %p182 = scmp.eq.s32.totalorder %s25, 0
      %p183 = por %p181, %p182
      %s184 = ssub.s32 %s19, %s26
      %p185 = scmp.eq.s32.totalorder %s184, 0
      %s187 = sadd.s32 %s186, 1
      %s188 = scalar_select %p185, %s186, %s187
      %p191 = pneg %p185
      %p192 = scmp.eq.s32.totalorder %s19, 1
      %p193 = por %p191, %p192
      %p194 = scmp.ne.s32.totalorder %s186, %s189
      %p195 = scmp.eq.s32.totalorder %s19, 0
      %p196 = por %p194, %p195
      %p197 = scmp.ne.s32.totalorder %s186, %s189
      %p198 = scmp.eq.s32.totalorder %s24, 1
      %p199 = por %p197, %p198
      %p200 = scmp.ne.s32.totalorder %s189, %s190
      %p201 = scmp.eq.s32.totalorder %s24, 0
      %p202 = por %p200, %p201
      %p203 = scmp.ne.s32.totalorder %s189, %s190
      %p204 = scmp.eq.s32.totalorder %s25, 1
      %p205 = por %p203, %p204
      %p207 = scmp.ne.s32.totalorder %s190, %s206
      %p208 = scmp.eq.s32.totalorder %s25, 0
      %p209 = por %p207, %p208
      %s210 = ssub.s32 %s19, %s26
      %p211 = scmp.eq.s32.totalorder %s210, 0
      %s213 = sadd.s32 %s212, 1
      %s214 = scalar_select %p211, %s212, %s213
      %p217 = pneg %p211
      %p218 = scmp.eq.s32.totalorder %s19, 1
      %p219 = por %p217, %p218
      %p220 = scmp.ne.s32.totalorder %s212, %s215
      %p221 = scmp.eq.s32.totalorder %s19, 0
      %p222 = por %p220, %p221
      %p223 = scmp.ne.s32.totalorder %s212, %s215
      %p224 = scmp.eq.s32.totalorder %s24, 1
      %p225 = por %p223, %p224
      %p226 = scmp.ne.s32.totalorder %s215, %s216
      %p227 = scmp.eq.s32.totalorder %s24, 0
      %p228 = por %p226, %p227
      %p229 = scmp.ne.s32.totalorder %s215, %s216
      %p230 = scmp.eq.s32.totalorder %s25, 1
      %p231 = por %p229, %p230
      %p233 = scmp.ne.s32.totalorder %s216, %s232
      %p234 = scmp.eq.s32.totalorder %s25, 0
      %p235 = por %p233, %p234
      %s236 = ssub.s32 %s19, %s26
      %p237 = scmp.eq.s32.totalorder %s236, 0
      %s239 = sadd.s32 %s238, 1
      %s240 = scalar_select %p237, %s238, %s239
      %p243 = pneg %p237
      %p244 = scmp.eq.s32.totalorder %s19, 1
      %p245 = por %p243, %p244
      %p246 = scmp.ne.s32.totalorder %s238, %s241
      %p247 = scmp.eq.s32.totalorder %s19, 0
      %p248 = por %p246, %p247
      %p249 = scmp.ne.s32.totalorder %s238, %s241
      %p250 = scmp.eq.s32.totalorder %s24, 1
      %p251 = por %p249, %p250
      %p252 = scmp.ne.s32.totalorder %s241, %s242
      %p253 = scmp.eq.s32.totalorder %s24, 0
      %p254 = por %p252, %p253
      %p255 = scmp.ne.s32.totalorder %s241, %s242
      %p256 = scmp.eq.s32.totalorder %s25, 1
      %p257 = por %p255, %p256
      %p259 = scmp.ne.s32.totalorder %s242, %s258
      %p260 = scmp.eq.s32.totalorder %s25, 0
      %p261 = por %p259, %p260
      %s263 = sadd.s32 %s262, 1
      %p266 = scmp.eq.s32.totalorder %s19, 1
      %p267 = scmp.ne.s32.totalorder %s262, %s264
      %p268 = scmp.eq.s32.totalorder %s19, 0
      %p269 = por %p267, %p268
      %p270 = scmp.ne.s32.totalorder %s262, %s264
      %p271 = scmp.eq.s32.totalorder %s24, 1
      %p272 = por %p270, %p271
      %p273 = scmp.ne.s32.totalorder %s264, %s265
      %p274 = scmp.eq.s32.totalorder %s24, 0
      %p275 = por %p273, %p274
      %p276 = scmp.ne.s32.totalorder %s264, %s265
      %p277 = scmp.eq.s32.totalorder %s25, 1
      %p278 = por %p276, %p277
      %p280 = scmp.ne.s32.totalorder %s265, %s279
      %p281 = scmp.eq.s32.totalorder %s25, 0
      %p282 = por %p280, %p281
      %p283 = scmp.le.s32.totalorder 1, %s19
      %p284 = scmp.lt.s32.totalorder %s19, 3
      %p285 = pnand %p283, %p284
      %p286 = pneg %p285
      // Predicated region
      $region9: #{tpu_custom_call.1} parent=5 // pred_check
        _
      $region10: #{tpu_custom_call.1} parent=5 // pred_check_branch
        %288 = sbr.rel (%p285) target = $region12
      $region11: #{tpu_custom_call.1} parent=5 // pred_region
        %s289 = ssub.s32 %s19, 1
        // Predicated region
        $region13: #{tpu_custom_call.1} parent=11 // pred_check
          %p290 = pneg %p40
        $region14: #{tpu_custom_call.1} parent=11 // pred_check_branch
          %292 = sbr.rel (%p290) target = $region16
        $region15: #{tpu_custom_call.1} parent=11 // pred_region
          _
        $region16: #{tpu_custom_call.1} parent=11 // pred_fallthru
          _
        // Predicated region
        $region17: #{tpu_custom_call.1} parent=11 // pred_check
          %p293 = pneg %p61
        $region18: #{tpu_custom_call.1} parent=11 // pred_check_branch
          %295 = sbr.rel (%p293) target = $region20
        $region19: #{tpu_custom_call.1} parent=11 // pred_region
          _
        $region20: #{tpu_custom_call.1} parent=11 // pred_fallthru
          _
        // Predicated region
        $region21: #{tpu_custom_call.1} parent=11 // pred_check
          %p296 = pneg %p82
        $region22: #{tpu_custom_call.1} parent=11 // pred_check_branch
          %298 = sbr.rel (%p296) target = $region24
        $region23: #{tpu_custom_call.1} parent=11 // pred_region
          _
        $region24: #{tpu_custom_call.1} parent=11 // pred_fallthru
          _
        // Predicated region
        $region25: #{tpu_custom_call.1} parent=11 // pred_check
          %p299 = pneg %p103
        $region26: #{tpu_custom_call.1} parent=11 // pred_check_branch
          %301 = sbr.rel (%p299) target = $region28
        $region27: #{tpu_custom_call.1} parent=11 // pred_region
          %s303 = ssub.s32 128, 128
          %304 = vsyncadd [#allocation6], %s303
          %s306 = sshll.u32 [#allocation5], 4
          %s307 = int_to_ptr.vmem [resolvable:$true] %s306
          %309 = dma.hbm_to_vmem [thread:$0]  %s3, 128, %s307, [#allocation6]
        $region28: #{tpu_custom_call.1} parent=11 // pred_fallthru
          _
        // Predicated region
        $region29: #{tpu_custom_call.1} parent=11 // pred_check
          %p310 = pneg %p124
        $region30: #{tpu_custom_call.1} parent=11 // pred_check_branch
          %312 = sbr.rel (%p310) target = $region32
        $region31: #{tpu_custom_call.1} parent=11 // pred_region
          %s314 = ssub.s32 16, 16
          %315 = vsyncadd [#allocation9], %s314
          %s317 = sshll.u32 [#allocation8], 4
          %s318 = int_to_ptr.vmem [resolvable:$true] %s317
          %320 = dma.hbm_to_vmem [thread:$0]  %s4, 16, %s318, [#allocation9]
        $region32: #{tpu_custom_call.1} parent=11 // pred_fallthru
          _
      $region12: #{tpu_custom_call.1} parent=5 // pred_fallthru
        _
      %p321 = scmp.lt.s32.totalorder %s19, 2
      // Predicated region
      $region33: #{tpu_custom_call.1} parent=5 // pred_check
        %p322 = pneg %p321
      $region34: #{tpu_custom_call.1} parent=5 // pred_check_branch
        %324 = sbr.rel (%p322) target = $region36
      $region35: #{tpu_custom_call.1} parent=5 // pred_region
        // Predicated region
        $region37: #{tpu_custom_call.1} parent=35 // pred_check
          %p325 = pneg %p144
        $region38: #{tpu_custom_call.1} parent=35 // pred_check_branch
          %327 = sbr.rel (%p325) target = $region40
        $region39: #{tpu_custom_call.1} parent=35 // pred_region
          %p328 = scmp.lt.s32.totalorder %s19, 1
          %s329 = scalar_select %p328, %s19, 1
          %s330 = smul.addr %s329, 4
          %s331 = smul.addr %s330, 8
          %s332 = scalar_lea.vmem %s5, %s331
        $region40: #{tpu_custom_call.1} parent=35 // pred_fallthru
          _
        // Predicated region
        $region41: #{tpu_custom_call.1} parent=35 // pred_check
          %p333 = pneg %p170
        $region42: #{tpu_custom_call.1} parent=35 // pred_check_branch
          %335 = sbr.rel (%p333) target = $region44
        $region43: #{tpu_custom_call.1} parent=35 // pred_region
          %s336 = sand.u32 %s19, 1
          %s337 = scalar_lea.sflag [#allocation6], %s336
          %s338 = sand.u32 %s160, 1
          %s339 = smul.addr %s338, 4
          %s340 = scalar_lea.vmem [#allocation10], %s339
          %s342 = ssub.s32 64, 64
          %343 = vsyncadd %s337, %s342
          %s344 = smul.addr %s19, 64
          %s345 = scalar_lea.hbm %s6, %s344
          %s347 = sshll.u32 %s340, 4
          %s348 = int_to_ptr.vmem [resolvable:$true] %s347
          %350 = dma.hbm_to_vmem [thread:$0]  %s345, 64, %s348, %s337
        $region44: #{tpu_custom_call.1} parent=35 // pred_fallthru
          _
        // Predicated region
        $region45: #{tpu_custom_call.1} parent=35 // pred_check
          %p351 = pneg %p196
        $region46: #{tpu_custom_call.1} parent=35 // pred_check_branch
          %353 = sbr.rel (%p351) target = $region48
        $region47: #{tpu_custom_call.1} parent=35 // pred_region
          %p354 = scmp.lt.s32.totalorder %s19, 1
          %s355 = scalar_select %p354, %s19, 1
          %s356 = scalar_lea.vmem %s7, %s355
        $region48: #{tpu_custom_call.1} parent=35 // pred_fallthru
          _
        // Predicated region
        $region49: #{tpu_custom_call.1} parent=35 // pred_check
          %p357 = pneg %p222
        $region50: #{tpu_custom_call.1} parent=35 // pred_check_branch
          %359 = sbr.rel (%p357) target = $region52
        $region51: #{tpu_custom_call.1} parent=35 // pred_region
          %s360 = sand.u32 %s19, 1
          %s361 = scalar_lea.sflag [#allocation6], %s360
          %s362 = sand.u32 %s212, 1
          %s363 = smul.addr %s362, 32
          %s364 = scalar_lea.vmem [#allocation11], %s363
          %s366 = ssub.s32 512, 512
          %367 = vsyncadd %s361, %s366
          %s368 = smul.addr %s19, 4
          %s369 = smul.addr %s368, 128
          %s370 = scalar_lea.hbm %s8, %s369
          %s371 = sshll.u32 %s364, 4
          %s372 = int_to_ptr.vmem [resolvable:$true] %s371
          %377 = dma.hbm_to_vmem [thread:$0]  %s370, 512, %s372, %s361, 128, 128, 8
        $region52: #{tpu_custom_call.1} parent=35 // pred_fallthru
          _
        // Predicated region
        $region53: #{tpu_custom_call.1} parent=35 // pred_check
          %p378 = pneg %p248
        $region54: #{tpu_custom_call.1} parent=35 // pred_check_branch
          %380 = sbr.rel (%p378) target = $region56
        $region55: #{tpu_custom_call.1} parent=35 // pred_region
          %p381 = scmp.lt.s32.totalorder %s19, 1
          %s382 = scalar_select %p381, %s19, 1
          %s383 = scalar_lea.vmem %s9, %s382
        $region56: #{tpu_custom_call.1} parent=35 // pred_fallthru
          _
      $region36: #{tpu_custom_call.1} parent=5 // pred_fallthru
        _
      %p384 = scmp.le.s32.totalorder 1, %s19
      %p385 = scmp.lt.s32.totalorder %s19, 3
      %p386 = pnand %p384, %p385
      %p387 = pneg %p386
      // Predicated region
      $region57: #{tpu_custom_call.1} parent=5 // pred_check
        _
      $region58: #{tpu_custom_call.1} parent=5 // pred_check_branch
        %389 = sbr.rel (%p386) target = $region60
      $region59: #{tpu_custom_call.1} parent=5 // pred_region
        %s390 = ssub.s32 %s19, 1
        // Predicated region
        $region61: #{tpu_custom_call.1} parent=59 // pred_check
          %p391 = pneg %p103
        $region62: #{tpu_custom_call.1} parent=59 // pred_check_branch
          %393 = sbr.rel (%p391) target = $region64
        $region63: #{tpu_custom_call.1} parent=59 // pred_region
          %394 = dma.done [#allocation6], 128
        $region64: #{tpu_custom_call.1} parent=59 // pred_fallthru
          _
        // Predicated region
        $region65: #{tpu_custom_call.1} parent=59 // pred_check
          %p395 = pneg %p124
        $region66: #{tpu_custom_call.1} parent=59 // pred_check_branch
          %397 = sbr.rel (%p395) target = $region68
        $region67: #{tpu_custom_call.1} parent=59 // pred_region
          %398 = dma.done [#allocation9], 16
        $region68: #{tpu_custom_call.1} parent=59 // pred_fallthru
          _
        %s399 = sand.u32 %s24, 1
        %s400 = scalar_lea.sflag [#allocation6], %s399
        %s401 = sand.u32 %s163, 1
        %s402 = smul.addr %s401, 4
        %s403 = scalar_lea.vmem [#allocation10], %s402
        // Predicated region
        $region69: #{tpu_custom_call.1} parent=59 // pred_check
          %p404 = pneg %p176
        $region70: #{tpu_custom_call.1} parent=59 // pred_check_branch
          %406 = sbr.rel (%p404) target = $region72
        $region71: #{tpu_custom_call.1} parent=59 // pred_region
          %407 = dma.done %s400, 64
        $region72: #{tpu_custom_call.1} parent=59 // pred_fallthru
          _
        %s408 = sand.u32 %s24, 1
        %s409 = scalar_lea.sflag [#allocation6], %s408
        %s410 = sand.u32 %s215, 1
        %s411 = smul.addr %s410, 32
        %s412 = scalar_lea.vmem [#allocation11], %s411
        // Predicated region
        $region73: #{tpu_custom_call.1} parent=59 // pred_check
          %p413 = pneg %p228
        $region74: #{tpu_custom_call.1} parent=59 // pred_check_branch
          %415 = sbr.rel (%p413) target = $region76
        $region75: #{tpu_custom_call.1} parent=59 // pred_region
          %416 = dma.done %s409, 512
        $region76: #{tpu_custom_call.1} parent=59 // pred_fallthru
          _
        %p417 = pneg %p40
        %p418 = pneg %p37
        %p419 = pneg %p61
        %p420 = pneg %p58
        %p421 = pneg %p82
        %p422 = pneg %p79
        %p423 = pneg %p103
        %p424 = pneg %p100
        %p425 = pneg %p124
        %p426 = pneg %p121
        %p427 = scmp.lt.s32.totalorder %s24, 1
        %s428 = scalar_select %p427, %s24, 1
        %s429 = smul.addr %s428, 4
        %s430 = smul.addr %s429, 8
        %s431 = scalar_lea.vmem %s5, %s430
        %p432 = pneg %p150
        %p433 = pneg %p147
        %s434 = sand.u32 %s24, 1
        %s435 = scalar_lea.sflag [#allocation6], %s434
        %s436 = sand.u32 %s163, 1
        %s437 = smul.addr %s436, 4
        %s438 = scalar_lea.vmem [#allocation10], %s437
        %p439 = pneg %p176
        %p440 = pneg %p173
        %p441 = scmp.lt.s32.totalorder %s24, 1
        %s442 = scalar_select %p441, %s24, 1
        %s443 = scalar_lea.vmem %s7, %s442
        %p444 = pneg %p202
        %p445 = pneg %p199
        %s446 = sand.u32 %s24, 1
        %s447 = scalar_lea.sflag [#allocation6], %s446
        %s448 = sand.u32 %s215, 1
        %s449 = smul.addr %s448, 32
        %s450 = scalar_lea.vmem [#allocation11], %s449
        %p451 = pneg %p228
        %p452 = pneg %p225
        %p453 = scmp.lt.s32.totalorder %s24, 1
        %s454 = scalar_select %p453, %s24, 1
        %s455 = scalar_lea.vmem %s9, %s454
        %p456 = pneg %p254
        %p457 = pneg %p251
        %p458 = pneg %p275
        %p459 = pneg %p272
        %p460 = scmp.lt.s32.totalorder %s24, 1
        %s461 = scalar_select %p460, %s24, 1
        %s462 = smul.addr %s461, 4
        %s463 = smul.addr %s462, 8
        %s464 = scalar_lea.vmem %s5, %s463
        %p465 = scmp.lt.s32.totalorder %s24, 1
        %s466 = scalar_select %p465, %s24, 1
        %s467 = scalar_lea.vmem %s7, %s466
        %p468 = scmp.lt.s32.totalorder %s24, 1
        %s469 = scalar_select %p468, %s24, 1
        %s470 = scalar_lea.vmem %s9, %s469
        %p472 = scmp.eq.s32.totalorder %s24, 0
        // Predicated region
        $region77: #{tpu_custom_call.1} parent=59 // pred_check
          %p473 = pneg %p472
        $region78: #{tpu_custom_call.1} parent=59 // pred_check_branch
          %475 = sbr.rel (%p473) target = $region80
        $region79: #{tpu_custom_call.1} parent=59 // pred_region
          %v476 = vld [vmem:[%s0] sm:$0x3]
          %v477 = vlaneseq
          %v478 = vshrl.u32 %v477, 7
          %v479 = vadd.s32 %v478, 8
          %v480 = vlaneseq
          %v481 = vshrl.u32 %v480, 7
          %v482 = vsub.s32 1, %v481
          %v483 = vrot.slane %v476, %v482
          %vm484 = vcmp.eq.s32.totalorder %v478, %v483
          %vm485 = vcmp.eq.s32.totalorder %v479, %v483
          %v486 = vsel %vm484, 1, 0
          %v487 = vsel %vm485, 1, 0
          %v488 = vcvt.s32.f32 %v486
          %v489 = vcvt.s32.f32 %v487
          %v490 = vpack.c.bf16 %v489, %v488
          %v492 = vunpack.c.l.b16 %v490
          %v493 = vunpack.c.h.b16 %v490
          %v494 = vpack.c.b16 %v492, %v492
          %v495 = vpack.c.b16 %v493, %v493
          %vm498 = vcmask 257024
          %499 = vst.msk [vmem:[#allocation3] sm:$0xf] %vm498, %v494
          %500 = vst.msk [vmem:[#allocation3 + $0x4] sm:$0xf] %vm498, %v495
          %v501 = vlaneseq
          %v502 = vshrl.u32 %v501, 7
          %v503 = vsub.s32 0, %v502
          %v504 = vrot.slane %v476, %v503
          %vm505 = vcmp.eq.s32.totalorder %v478, %v504
          %vm506 = vcmp.eq.s32.totalorder %v479, %v504
          %v507 = vsel %vm505, 1, 0
          %v508 = vsel %vm506, 1, 0
          %v509 = vcvt.s32.f32 %v507
          %v510 = vcvt.s32.f32 %v508
          %v511 = vpack.c.bf16 %v510, %v509
          %v513 = vunpack.c.l.b16 %v511
          %v514 = vunpack.c.h.b16 %v511
          %v515 = vpack.c.b16 %v513, %v513
          %v516 = vpack.c.b16 %v514, %v514
          %519 = vst.msk [vmem:[#allocation4] sm:$0xf] %vm498, %v515
          %520 = vst.msk [vmem:[#allocation4 + $0x4] sm:$0xf] %vm498, %v516
          %v521 = vld [vmem:[%s1] sm:$0xff]
          %v522 = vld [vmem:[%s1 + $0x8] sm:$0xff]
          %v523 = vpack.c.bf16 %v522, %v521
          %v524 = vld [vmem:[#allocation5] sm:$0xff]
          %v525 = vpack.c.bf16 %v524, %v524
          %v526 = vld [vmem:[#allocation8] sm:$0x1]
          %v528 = vlaneseq
          %v529 = vshrl.u32 %v528, 7
          %v530 = vsub.s32 0, %v529
          %v531 = vrot.slane %v526, %v530
          %vm533 = vcmask 64512
          %v535 = vsel %vm533, %v523, 0
          %vm537 = vcmask 1043456
          %v539 = vsel %vm537, %v525, 0
          %541 = vmatprep.subr.bf16.mxu0 0
          %542 = vmatpush1.bf16.msra.mxu0 0
          %543 = vmatprep.subr.bf16.mxu0 0
          %544 = vmatpush1.bf16.msra.mxu0 0
          %545 = vmatprep.subr.bf16.mxu0 0
          %546 = vmatpush1.bf16.msra.mxu0 0
          %547 = vmatprep.subr.bf16.mxu0 0
          %548 = vmatpush1.bf16.msra.mxu0 0
          %549 = vmatprep.subr.bf16.mxu0 0
          %550 = vmatpush1.bf16.msra.mxu0 0
          %551 = vmatprep.subr.bf16.mxu0 0
          %552 = vmatpush1.bf16.msra.mxu0 0
          %553 = vmatprep.subr.bf16.mxu0 0
          %554 = vmatpush1.bf16.msra.mxu0 0
          %555 = vmatprep.subr.bf16.mxu0 0
          %556 = vmatpush1.bf16.msra.mxu0 %v539
          %557 = vmatprep.subr.bf16.mxu0 0
          %558 = vmatpush2.bf16.msra.mxu0 0
          %559 = vmatprep.subr.bf16.mxu0 0
          %560 = vmatpush2.bf16.msra.mxu0 0
          %561 = vmatprep.subr.bf16.mxu0 0
          %562 = vmatpush2.bf16.msra.mxu0 0
          %563 = vmatprep.subr.bf16.mxu0 0
          %564 = vmatpush2.bf16.msra.mxu0 0
          %565 = vmatprep.subr.bf16.mxu0 0
          %566 = vmatpush2.bf16.msra.mxu0 0
          %567 = vmatprep.subr.bf16.mxu0 0
          %568 = vmatpush2.bf16.msra.mxu0 0
          %569 = vmatprep.subr.bf16.mxu0 0
          %570 = vmatpush2.bf16.msra.mxu0 0
          %571 = vmatprep.subr.bf16.mxu0 0
          %572 = vmatpush2.bf16.msra.mxu0 0
          %573 = vmatprep.mubr.bf16.mxu0 0
          %574 = vmatmul.mubr.bf16.gmra.mxu0 %v535
          %v575 = vpop.f32.mrf.mxu0
          %v576 = vadd.f32 %v531, %v575
          %v577 = vpop.f32.mrf.mxu0
          %v578 = vpop.f32.mrf.mxu0
          %v579 = vadd.f32 %v531, %v578
          %v580 = vpop.f32.mrf.mxu0
          %581 = vdwg.mxu0
          %v582 = vmax.f32 %v576, 0.0
          %v583 = vmax.f32 %v579, 0.0
          %vm584 = vcmask 261120
          %585 = vst.msk [vmem:[#allocation2] sm:$0xff] %vm584, %v582
          %586 = vst.msk [vmem:[#allocation2 + $0x8] sm:$0xff] %vm584, %v583
        $region80: #{tpu_custom_call.1} parent=59 // pred_fallthru
          _
        %v587 = vld [vmem:[#allocation2] sm:$0xff]
        %v588 = vld [vmem:[#allocation2 + $0x8] sm:$0xff]
        %v589 = vpack.c.bf16 %v588, %v587
        %v590 = vld [vmem:[%s2] sm:$0xff]
        %v591 = vld [vmem:[%s2 + $0x8] sm:$0xff]
        %v592 = vld [vmem:[%s2 + $0x10] sm:$0xff]
        %v593 = vld [vmem:[%s2 + $0x18] sm:$0xff]
        %v594 = vpack.c.bf16 %v591, %v590
        %v595 = vpack.c.bf16 %v593, %v592
        %v596 = vld [vmem:[#allocation3] sm:$0xf]
        %v597 = vld [vmem:[#allocation3 + $0x4] sm:$0xf]
        %v598 = vld [vmem:[#allocation4] sm:$0xf]
        %v599 = vld [vmem:[#allocation4 + $0x4] sm:$0xf]
        %v600 = vld [vmem:[%s464] sm:$0xff]
        %v601 = vld [vmem:[%s464 + $0x8] sm:$0xff]
        %v602 = vld [vmem:[%s464 + $0x10] sm:$0xff]
        %v603 = vld [vmem:[%s464 + $0x18] sm:$0xff]
        %v604 = vpack.c.bf16 %v601, %v600
        %v605 = vpack.c.bf16 %v603, %v602
        %vm606 = vcmask 261120
        %v608 = vsel %vm606, %v589, 0
        %610 = vmatprep.subr.bf16.mxu0 0
        %611 = vmatpush1.bf16.msra.mxu0 0
        %612 = vmatprep.subr.bf16.mxu0 0
        %613 = vmatpush1.bf16.msra.mxu0 0
        %614 = vmatprep.subr.bf16.mxu0 0
        %615 = vmatpush1.bf16.msra.mxu0 0
        %616 = vmatprep.subr.bf16.mxu0 0
        %617 = vmatpush1.bf16.msra.mxu0 0
        %618 = vmatprep.subr.bf16.mxu0 0
        %619 = vmatpush1.bf16.msra.mxu0 0
        %620 = vmatprep.subr.bf16.mxu0 0
        %621 = vmatpush1.bf16.msra.mxu0 0
        %622 = vmatprep.subr.bf16.mxu0 0
        %623 = vmatpush1.bf16.msra.mxu0 %v605
        %624 = vmatprep.subr.bf16.mxu0 0
        %625 = vmatpush1.bf16.msra.mxu0 %v604
        %626 = vmatprep.subr.bf16.mxu0 0
        %627 = vmatpush2.bf16.msra.mxu0 0
        %628 = vmatprep.subr.bf16.mxu0 0
        %629 = vmatpush2.bf16.msra.mxu0 0
        %630 = vmatprep.subr.bf16.mxu0 0
        %631 = vmatpush2.bf16.msra.mxu0 0
        %632 = vmatprep.subr.bf16.mxu0 0
        %633 = vmatpush2.bf16.msra.mxu0 0
        %634 = vmatprep.subr.bf16.mxu0 0
        %635 = vmatpush2.bf16.msra.mxu0 0
        %636 = vmatprep.subr.bf16.mxu0 0
        %637 = vmatpush2.bf16.msra.mxu0 0
        %638 = vmatprep.subr.bf16.mxu0 0
        %639 = vmatpush2.bf16.msra.mxu0 0
        %640 = vmatprep.subr.bf16.mxu0 0
        %641 = vmatpush2.bf16.msra.mxu0 0
        %642 = vmatprep.mubr.bf16.mxu0 0
        %643 = vmatmul.mubr.bf16.gmra.mxu0 %v608
        %v644 = vpop.f32.mrf.mxu0
        %v645 = vadd.f32 0.0, %v644
        %v646 = vpop.f32.mrf.mxu0
        %v647 = vpop.f32.mrf.mxu0
        %v648 = vadd.f32 0.0, %v647
        %v649 = vpop.f32.mrf.mxu0
        %650 = vdwg.mxu0
        %v651 = vpack.c.bf16 %v648, %v645
        %v652 = vld [vmem:[%s403] sm:$0xf]
        %v653 = vpack.c.bf16 %v652, %v652
        %vm654 = vcmask 31744
        %v656 = vsel %vm654, %v594, 0
        %v659 = vsel %vm654, %v595, 0
        %vm661 = vcmask 1041408
        %v663 = vsel %vm661, %v653, 0
        %665 = vmatprep.subr.bf16.mxu0 0
        %666 = vmatpush1.bf16.msra.mxu0 0
        %667 = vmatprep.subr.bf16.mxu0 0
        %668 = vmatpush1.bf16.msra.mxu0 0
        %669 = vmatprep.subr.bf16.mxu0 0
        %670 = vmatpush1.bf16.msra.mxu0 0
        %671 = vmatprep.subr.bf16.mxu0 0
        %672 = vmatpush1.bf16.msra.mxu0 0
        %673 = vmatprep.subr.bf16.mxu0 0
        %674 = vmatpush1.bf16.msra.mxu0 0
        %675 = vmatprep.subr.bf16.mxu0 0
        %676 = vmatpush1.bf16.msra.mxu0 0
        %677 = vmatprep.subr.bf16.mxu0 0
        %678 = vmatpush1.bf16.msra.mxu0 0
        %679 = vmatprep.subr.bf16.mxu0 0
        %680 = vmatpush1.bf16.msra.mxu0 %v663
        %681 = vmatprep.subr.bf16.mxu0 0
        %682 = vmatpush2.bf16.msra.mxu0 0
        %683 = vmatprep.subr.bf16.mxu0 0
        %684 = vmatpush2.bf16.msra.mxu0 0
        %685 = vmatprep.subr.bf16.mxu0 0
        %686 = vmatpush2.bf16.msra.mxu0 0
        %687 = vmatprep.subr.bf16.mxu0 0
        %688 = vmatpush2.bf16.msra.mxu0 0
        %689 = vmatprep.subr.bf16.mxu0 0
        %690 = vmatpush2.bf16.msra.mxu0 0
        %691 = vmatprep.subr.bf16.mxu0 0
        %692 = vmatpush2.bf16.msra.mxu0 0
        %693 = vmatprep.subr.bf16.mxu0 0
        %694 = vmatpush2.bf16.msra.mxu0 0
        %695 = vmatprep.subr.bf16.mxu0 0
        %696 = vmatpush2.bf16.msra.mxu0 0
        %697 = vmatprep.mubr.bf16.mxu0 0
        %698 = vmatmul.mubr.bf16.gmra.mxu0 %v656
        %v699 = vpop.f32.mrf.mxu0
        %v700 = vadd.f32 0.0, %v699
        %v701 = vpop.f32.mrf.mxu0
        %v702 = vpop.f32.mrf.mxu0
        %v703 = vadd.f32 0.0, %v702
        %v704 = vpop.f32.mrf.mxu0
        %705 = vmatprep.mubr.bf16.mxu0 0
        %706 = vmatmul.mubr.bf16.gmra.mxu0 %v659
        %v707 = vpop.f32.mrf.mxu0
        %v708 = vadd.f32 0.0, %v707
        %v709 = vpop.f32.mrf.mxu0
        %v710 = vpop.f32.mrf.mxu0
        %v711 = vadd.f32 0.0, %v710
        %v712 = vpop.f32.mrf.mxu0
        %713 = vdwg.mxu0
        %v716 = vunpack.c.l.b16 %v598
        %v717 = vunpack.c.l.b16 %v599
        %v718 = vpack.c.b16 %v717, %v716
        %720 = vxpose.xlu0.c.b16.start [1/8] %v718, 128
        %721 = vxpose.xlu0.c.b16.cont [2/8] 0, 128
        %722 = vxpose.xlu0.c.b16.cont [3/8] 0, 128
        %723 = vxpose.xlu0.c.b16.cont [4/8] 0, 128
        %724 = vxpose.xlu0.c.b16.cont [5/8] 0, 128
        %725 = vxpose.xlu0.c.b16.cont [6/8] 0, 128
        %726 = vxpose.xlu0.c.b16.cont [7/8] 0, 128
        %727 = vxpose.xlu0.c.b16.end [8/8] 0, 128
        %v728 = vpop.trf.xlu0
        %v729 = vpop.trf.xlu0
        %v730 = vpop.trf.xlu0
        %v731 = vpop.trf.xlu0
        %v732 = vpop.trf.xlu0
        %v733 = vpop.trf.xlu0
        %v734 = vpop.trf.xlu0
        %v735 = vpop.trf.xlu0
        %737 = vrot.lane.b32.xlu0 %v651, 64
        %v738 = vpop.permute.xlu0 %737
        %vm740 = vcmask 130048
        %v742 = vsel %vm740, %v728, 0
        %v745 = vsel %vm740, %v729, 0
        %747 = vmatprep.subr.bf16.mxu0 0
        %748 = vmatpush1.bf16.msra.mxu0 0
        %749 = vmatprep.subr.bf16.mxu0 0
        %750 = vmatpush1.bf16.msra.mxu0 0
        %751 = vmatprep.subr.bf16.mxu0 0
        %752 = vmatpush1.bf16.msra.mxu0 0
        %753 = vmatprep.subr.bf16.mxu0 0
        %754 = vmatpush1.bf16.msra.mxu0 0
        %755 = vmatprep.subr.bf16.mxu0 0
        %756 = vmatpush1.bf16.msra.mxu0 0
        %757 = vmatprep.subr.bf16.mxu0 0
        %758 = vmatpush1.bf16.msra.mxu0 0
        %759 = vmatprep.subr.bf16.mxu0 0
        %760 = vmatpush1.bf16.msra.mxu0 0
        %761 = vmatprep.subr.bf16.mxu0 0
        %762 = vmatpush1.bf16.msra.mxu0 %v738
        %763 = vmatprep.subr.bf16.mxu0 0
        %764 = vmatpush2.bf16.msra.mxu0 0
        %765 = vmatprep.subr.bf16.mxu0 0
        %766 = vmatpush2.bf16.msra.mxu0 0
        %767 = vmatprep.subr.bf16.mxu0 0
        %768 = vmatpush2.bf16.msra.mxu0 0
        %769 = vmatprep.subr.bf16.mxu0 0
        %770 = vmatpush2.bf16.msra.mxu0 0
        %771 = vmatprep.subr.bf16.mxu0 0
        %772 = vmatpush2.bf16.msra.mxu0 0
        %773 = vmatprep.subr.bf16.mxu0 0
        %774 = vmatpush2.bf16.msra.mxu0 0
        %775 = vmatprep.subr.bf16.mxu0 0
        %776 = vmatpush2.bf16.msra.mxu0 0
        %777 = vmatprep.subr.bf16.mxu0 0
        %778 = vmatpush2.bf16.msra.mxu0 0
        %779 = vmatprep.mubr.bf16.mxu0 0
        %780 = vmatmul.mubr.bf16.gmra.mxu0 %v742
        %v781 = vpop.f32.mrf.mxu0
        %v782 = vadd.f32 0.0, %v781
        %v783 = vpop.f32.mrf.mxu0
        %v784 = vpop.f32.mrf.mxu0
        %v785 = vadd.f32 0.0, %v784
        %v786 = vpop.f32.mrf.mxu0
        %787 = vmatprep.mubr.bf16.mxu0 0
        %788 = vmatmul.mubr.bf16.gmra.mxu0 %v745
        %v789 = vpop.f32.mrf.mxu0
        %v790 = vadd.f32 0.0, %v789
        %v791 = vpop.f32.mrf.mxu0
        %v792 = vpop.f32.mrf.mxu0
        %v793 = vadd.f32 0.0, %v792
        %v794 = vpop.f32.mrf.mxu0
        %795 = vdwg.mxu0
        %v798 = vunpack.c.l.b16 %v596
        %v799 = vunpack.c.l.b16 %v597
        %v800 = vpack.c.b16 %v799, %v798
        %802 = vxpose.xlu0.c.b16.start [1/8] %v800, 128
        %803 = vxpose.xlu0.c.b16.cont [2/8] 0, 128
        %804 = vxpose.xlu0.c.b16.cont [3/8] 0, 128
        %805 = vxpose.xlu0.c.b16.cont [4/8] 0, 128
        %806 = vxpose.xlu0.c.b16.cont [5/8] 0, 128
        %807 = vxpose.xlu0.c.b16.cont [6/8] 0, 128
        %808 = vxpose.xlu0.c.b16.cont [7/8] 0, 128
        %809 = vxpose.xlu0.c.b16.end [8/8] 0, 128
        %v810 = vpop.trf.xlu0
        %v811 = vpop.trf.xlu0
        %v812 = vpop.trf.xlu0
        %v813 = vpop.trf.xlu0
        %v814 = vpop.trf.xlu0
        %v815 = vpop.trf.xlu0
        %v816 = vpop.trf.xlu0
        %v817 = vpop.trf.xlu0
        %v819 = vsel %vm740, %v810, 0
        %v822 = vsel %vm740, %v811, 0
        %824 = vmatprep.subr.bf16.mxu0 0
        %825 = vmatpush1.bf16.msra.mxu0 0
        %826 = vmatprep.subr.bf16.mxu0 0
        %827 = vmatpush1.bf16.msra.mxu0 0
        %828 = vmatprep.subr.bf16.mxu0 0
        %829 = vmatpush1.bf16.msra.mxu0 0
        %830 = vmatprep.subr.bf16.mxu0 0
        %831 = vmatpush1.bf16.msra.mxu0 0
        %832 = vmatprep.subr.bf16.mxu0 0
        %833 = vmatpush1.bf16.msra.mxu0 0
        %834 = vmatprep.subr.bf16.mxu0 0
        %835 = vmatpush1.bf16.msra.mxu0 0
        %836 = vmatprep.subr.bf16.mxu0 0
        %837 = vmatpush1.bf16.msra.mxu0 0
        %838 = vmatprep.subr.bf16.mxu0 0
        %839 = vmatpush1.bf16.msra.mxu0 %v651
        %840 = vmatprep.subr.bf16.mxu0 0
        %841 = vmatpush2.bf16.msra.mxu0 0
        %842 = vmatprep.subr.bf16.mxu0 0
        %843 = vmatpush2.bf16.msra.mxu0 0
        %844 = vmatprep.subr.bf16.mxu0 0
        %845 = vmatpush2.bf16.msra.mxu0 0
        %846 = vmatprep.subr.bf16.mxu0 0
        %847 = vmatpush2.bf16.msra.mxu0 0
        %848 = vmatprep.subr.bf16.mxu0 0
        %849 = vmatpush2.bf16.msra.mxu0 0
        %850 = vmatprep.subr.bf16.mxu0 0
        %851 = vmatpush2.bf16.msra.mxu0 0
        %852 = vmatprep.subr.bf16.mxu0 0
        %853 = vmatpush2.bf16.msra.mxu0 0
        %854 = vmatprep.subr.bf16.mxu0 0
        %855 = vmatpush2.bf16.msra.mxu0 0
        %856 = vmatprep.mubr.bf16.mxu0 0
        %857 = vmatmul.mubr.bf16.gmra.mxu0 %v819
        %v858 = vpop.f32.mrf.mxu0
        %v859 = vadd.f32 %v782, %v858
        %v860 = vpop.f32.mrf.mxu0
        %v861 = vpop.f32.mrf.mxu0
        %v862 = vadd.f32 %v785, %v861
        %v863 = vpop.f32.mrf.mxu0
        %864 = vmatprep.mubr.bf16.mxu0 0
        %865 = vmatmul.mubr.bf16.gmra.mxu0 %v822
        %v866 = vpop.f32.mrf.mxu0
        %v867 = vadd.f32 %v790, %v866
        %v868 = vpop.f32.mrf.mxu0
        %v869 = vpop.f32.mrf.mxu0
        %v870 = vadd.f32 %v793, %v869
        %v871 = vpop.f32.mrf.mxu0
        %872 = vdwg.mxu0
        %v873 = vadd.f32 %v859, %v700
        %v874 = vadd.f32 %v862, %v703
        %v875 = vadd.f32 %v867, %v708
        %v876 = vadd.f32 %v870, %v711
        %v877 = vld [vmem:[%s467] sm:$0x1]
        %v879 = vlaneseq
        %v880 = vshrl.u32 %v879, 7
        %v881 = vsub.s32 0, %v880
        %v882 = vrot.slane %v877, %v881
        %v884 = vadd.f32 %v873, %v882
        %v885 = vadd.f32 %v874, %v882
        %v886 = vadd.f32 %v875, %v882
        %v887 = vadd.f32 %v876, %v882
        %v888 = vxor.u32 %v884, 2147483648
        %v889 = vxor.u32 %v885, 2147483648
        %v890 = vxor.u32 %v886, 2147483648
        %v891 = vxor.u32 %v887, 2147483648
        %v892 = vmul.f32 %v888, 1.442695
        %v893 = vpow.pop %v892
        %v894 = vmul.f32 %v889, 1.442695
        %v895 = vpow.pop %v894
        %v896 = vmul.f32 %v890, 1.442695
        %v897 = vpow.pop %v896
        %v898 = vmul.f32 %v891, 1.442695
        %v899 = vpow.pop %v898
        %v900 = vadd.f32 %v893, 1.0
        %v901 = vadd.f32 %v895, 1.0
        %v902 = vadd.f32 %v897, 1.0
        %v903 = vadd.f32 %v899, 1.0
        %v904 = vrcp.pop %v900
        %v905 = vmul.f32 1.0, %v904
        %v906 = vrcp.pop %v901
        %v907 = vmul.f32 1.0, %v906
        %v908 = vrcp.pop %v902
        %v909 = vmul.f32 1.0, %v908
        %v910 = vrcp.pop %v903
        %v911 = vmul.f32 1.0, %v910
        %v912 = vmax.f32 %v884, 0.0
        %v913 = vmax.f32 %v885, 0.0
        %v914 = vmax.f32 %v886, 0.0
        %v915 = vmax.f32 %v887, 0.0
        %vm916 = vcmp.ne.f32.partialorder %v884, %v884
        %vm917 = vcmp.ne.f32.partialorder %v885, %v885
        %vm918 = vcmp.ne.f32.partialorder %v886, %v886
        %vm919 = vcmp.ne.f32.partialorder %v887, %v887
        %v920 = vadd.f32 %v884, 0.0
        %v921 = vadd.f32 %v885, 0.0
        %v922 = vadd.f32 %v886, 0.0
        %v923 = vadd.f32 %v887, 0.0
        %v924 = vand.u32 2147483647, %v884
        %v925 = vand.u32 2147483647, %v885
        %v926 = vand.u32 2147483647, %v886
        %v927 = vand.u32 2147483647, %v887
        %v928 = vsub.f32 0.0, %v924
        %v929 = vsub.f32 0.0, %v925
        %v930 = vsub.f32 0.0, %v926
        %v931 = vsub.f32 0.0, %v927
        %v932 = vmul.f32 %v928, 1.442695
        %v933 = vpow.pop %v932
        %v934 = vmul.f32 %v929, 1.442695
        %v935 = vpow.pop %v934
        %v936 = vmul.f32 %v930, 1.442695
        %v937 = vpow.pop %v936
        %v938 = vmul.f32 %v931, 1.442695
        %v939 = vpow.pop %v938
        %v940 = vadd.f32 %v933, 1.0
        %v941 = vlog2.pop %v940
        %v942 = vmul.f32 %v941, 0.6931472
        %v943 = vmul.f32 -0.5, %v933
        %v944 = vadd.f32 %v943, 1.0
        %v945 = vmul.f32 %v944, %v933
        %v946 = vand.u32 2147483647, %v933
        %vm947 = vcmp.lt.f32.partialorder %v946, 0.0004427343
        %v948 = vsel %vm947, %v945, %v942
        %v949 = vadd.f32 %v935, 1.0
        %v950 = vlog2.pop %v949
        %v951 = vmul.f32 %v950, 0.6931472
        %v952 = vmul.f32 -0.5, %v935
        %v953 = vadd.f32 %v952, 1.0
        %v954 = vmul.f32 %v953, %v935
        %v955 = vand.u32 2147483647, %v935
        %vm956 = vcmp.lt.f32.partialorder %v955, 0.0004427343
        %v957 = vsel %vm956, %v954, %v951
        %v958 = vadd.f32 %v937, 1.0
        %v959 = vlog2.pop %v958
        %v960 = vmul.f32 %v959, 0.6931472
        %v961 = vmul.f32 -0.5, %v937
        %v962 = vadd.f32 %v961, 1.0
        %v963 = vmul.f32 %v962, %v937
        %v964 = vand.u32 2147483647, %v937
        %vm965 = vcmp.lt.f32.partialorder %v964, 0.0004427343
        %v966 = vsel %vm965, %v963, %v960
        %v967 = vadd.f32 %v939, 1.0
        %v968 = vlog2.pop %v967
        %v969 = vmul.f32 %v968, 0.6931472
        %v970 = vmul.f32 -0.5, %v939
        %v971 = vadd.f32 %v970, 1.0
        %v972 = vmul.f32 %v971, %v939
        %v973 = vand.u32 2147483647, %v939
        %vm974 = vcmp.lt.f32.partialorder %v973, 0.0004427343
        %v975 = vsel %vm974, %v972, %v969
        %v976 = vadd.f32 %v912, %v948
        %v977 = vadd.f32 %v913, %v957
        %v978 = vadd.f32 %v914, %v966
        %v979 = vadd.f32 %v915, %v975
        %v980 = vsel %vm916, %v920, %v976
        %v981 = vsel %vm917, %v921, %v977
        %v982 = vsel %vm918, %v922, %v978
        %v983 = vsel %vm919, %v923, %v979
        %988 = vrot.lane.b32.xlu0 %v980, 96
        %v989 = vpop.permute.xlu0 %988
        %990 = vrot.lane.b32.xlu0 %v981, 96
        %v991 = vpop.permute.xlu0 %990
        %992 = vrot.lane.b32.xlu0 %v982, 96
        %v993 = vpop.permute.xlu0 %992
        %994 = vrot.lane.b32.xlu0 %v983, 96
        %v995 = vpop.permute.xlu0 %994
        %v1000 = vmul.f32 %v905, %v989
        %v1001 = vmul.f32 %v907, %v991
        %v1002 = vmul.f32 %v909, %v993
        %v1003 = vmul.f32 %v911, %v995
        %v1004 = vpack.c.bf16 %v1001, %v1000
        %v1005 = vpack.c.bf16 %v1003, %v1002
        %v1007 = vsel %vm606, %v800, 0
        %1009 = vmatprep.subr.bf16.mxu0 0
        %1010 = vmatpush1.bf16.msra.mxu0 0
        %1011 = vmatprep.subr.bf16.mxu0 0
        %1012 = vmatpush1.bf16.msra.mxu0 0
        %1013 = vmatprep.subr.bf16.mxu0 0
        %1014 = vmatpush1.bf16.msra.mxu0 0
        %1015 = vmatprep.subr.bf16.mxu0 0
        %1016 = vmatpush1.bf16.msra.mxu0 0
        %1017 = vmatprep.subr.bf16.mxu0 0
        %1018 = vmatpush1.bf16.msra.mxu0 0
        %1019 = vmatprep.subr.bf16.mxu0 0
        %1020 = vmatpush1.bf16.msra.mxu0 0
        %1021 = vmatprep.subr.bf16.mxu0 0
        %1022 = vmatpush1.bf16.msra.mxu0 %v1005
        %1023 = vmatprep.subr.bf16.mxu0 0
        %1024 = vmatpush1.bf16.msra.mxu0 %v1004
        %1025 = vmatprep.subr.bf16.mxu0 0
        %1026 = vmatpush2.bf16.msra.mxu0 0
        %1027 = vmatprep.subr.bf16.mxu0 0
        %1028 = vmatpush2.bf16.msra.mxu0 0
        %1029 = vmatprep.subr.bf16.mxu0 0
        %1030 = vmatpush2.bf16.msra.mxu0 0
        %1031 = vmatprep.subr.bf16.mxu0 0
        %1032 = vmatpush2.bf16.msra.mxu0 0
        %1033 = vmatprep.subr.bf16.mxu0 0
        %1034 = vmatpush2.bf16.msra.mxu0 0
        %1035 = vmatprep.subr.bf16.mxu0 0
        %1036 = vmatpush2.bf16.msra.mxu0 0
        %1037 = vmatprep.subr.bf16.mxu0 0
        %1038 = vmatpush2.bf16.msra.mxu0 0
        %1039 = vmatprep.subr.bf16.mxu0 0
        %1040 = vmatpush2.bf16.msra.mxu0 0
        %1041 = vmatprep.mubr.bf16.mxu0 0
        %1042 = vmatmul.mubr.bf16.gmra.mxu0 %v1007
        %v1043 = vpop.f32.mrf.mxu0
        %v1044 = vadd.f32 0.0, %v1043
        %v1045 = vpop.f32.mrf.mxu0
        %v1046 = vpop.f32.mrf.mxu0
        %v1047 = vadd.f32 0.0, %v1046
        %v1048 = vpop.f32.mrf.mxu0
        %1049 = vdwg.mxu0
        %v1050 = vadd.f32 %v587, %v1044
        %v1051 = vadd.f32 %v588, %v1047
        %v1052 = vpack.c.bf16 %v1051, %v1050
        %v1053 = vld [vmem:[%s412] sm:$0xff]
        %v1054 = vld [vmem:[%s412 + $0x8] sm:$0xff]
        %v1055 = vld [vmem:[%s412 + $0x10] sm:$0xff]
        %v1056 = vld [vmem:[%s412 + $0x18] sm:$0xff]
        %v1057 = vpack.c.bf16 %v1054, %v1053
        %v1058 = vpack.c.bf16 %v1056, %v1055
        %v1059 = vld [vmem:[%s470] sm:$0x1]
        %v1061 = vlaneseq
        %v1062 = vshrl.u32 %v1061, 7
        %v1063 = vsub.s32 0, %v1062
        %v1064 = vrot.slane %v1059, %v1063
        %v1067 = vsel %vm606, %v1052, 0
        %1069 = vmatprep.subr.bf16.mxu0 0
        %1070 = vmatpush1.bf16.msra.mxu0 0
        %1071 = vmatprep.subr.bf16.mxu0 0
        %1072 = vmatpush1.bf16.msra.mxu0 0
        %1073 = vmatprep.subr.bf16.mxu0 0
        %1074 = vmatpush1.bf16.msra.mxu0 0
        %1075 = vmatprep.subr.bf16.mxu0 0
        %1076 = vmatpush1.bf16.msra.mxu0 0
        %1077 = vmatprep.subr.bf16.mxu0 0
        %1078 = vmatpush1.bf16.msra.mxu0 0
        %1079 = vmatprep.subr.bf16.mxu0 0
        %1080 = vmatpush1.bf16.msra.mxu0 0
        %1081 = vmatprep.subr.bf16.mxu0 0
        %1082 = vmatpush1.bf16.msra.mxu0 %v1058
        %1083 = vmatprep.subr.bf16.mxu0 0
        %1084 = vmatpush1.bf16.msra.mxu0 %v1057
        %1085 = vmatprep.subr.bf16.mxu0 0
        %1086 = vmatpush2.bf16.msra.mxu0 0
        %1087 = vmatprep.subr.bf16.mxu0 0
        %1088 = vmatpush2.bf16.msra.mxu0 0
        %1089 = vmatprep.subr.bf16.mxu0 0
        %1090 = vmatpush2.bf16.msra.mxu0 0
        %1091 = vmatprep.subr.bf16.mxu0 0
        %1092 = vmatpush2.bf16.msra.mxu0 0
        %1093 = vmatprep.subr.bf16.mxu0 0
        %1094 = vmatpush2.bf16.msra.mxu0 0
        %1095 = vmatprep.subr.bf16.mxu0 0
        %1096 = vmatpush2.bf16.msra.mxu0 0
        %1097 = vmatprep.subr.bf16.mxu0 0
        %1098 = vmatpush2.bf16.msra.mxu0 0
        %1099 = vmatprep.subr.bf16.mxu0 0
        %1100 = vmatpush2.bf16.msra.mxu0 0
        %1101 = vmatprep.mubr.bf16.mxu0 0
        %1102 = vmatmul.mubr.bf16.gmra.mxu0 %v1067
        %v1103 = vpop.f32.mrf.mxu0
        %v1104 = vadd.f32 %v1064, %v1103
        %v1105 = vpop.f32.mrf.mxu0
        %v1106 = vpop.f32.mrf.mxu0
        %v1107 = vadd.f32 %v1064, %v1106
        %v1108 = vpop.f32.mrf.mxu0
        %1109 = vdwg.mxu0
        %v1110 = vmax.f32 %v1104, 0.0
        %v1111 = vmax.f32 %v1107, 0.0
        %1112 = vst.msk [vmem:[#allocation2] sm:$0xff] %vm606, %v1110
        %1113 = vst.msk [vmem:[#allocation2 + $0x8] sm:$0xff] %vm606, %v1111
        %1114 = vst.msk [vmem:[#allocation12] sm:$0xff] %vm606, %v1110
        %1115 = vst.msk [vmem:[#allocation12 + $0x8] sm:$0xff] %vm606, %v1111
        // Predicated region
        $region81: #{tpu_custom_call.1} parent=59 // pred_check
          %p1116 = pneg %p272
        $region82: #{tpu_custom_call.1} parent=59 // pred_check_branch
          %1118 = sbr.rel (%p1116) target = $region84
        $region83: #{tpu_custom_call.1} parent=59 // pred_region
          %s1120 = ssub.s32 256, 256
          %1121 = vsyncadd [#allocation7], %s1120
          %s1122 = sshll.u32 [#allocation12], 4
          %s1123 = int_to_ptr.vmem [resolvable:$true] %s1122
          %1128 = dma.vmem_to_hbm [thread:$0]  %s1123, 256, %s10, [#allocation7], 128, 128, 8
        $region84: #{tpu_custom_call.1} parent=59 // pred_fallthru
          _
        // Predicated region
        $region85: #{tpu_custom_call.1} parent=59 // pred_check
          %p1129 = pneg %p272
        $region86: #{tpu_custom_call.1} parent=59 // pred_check_branch
          %1131 = sbr.rel (%p1129) target = $region88
        $region87: #{tpu_custom_call.1} parent=59 // pred_region
          %1132 = dma.done [#allocation7], 256
        $region88: #{tpu_custom_call.1} parent=59 // pred_fallthru
          _
      $region60: #{tpu_custom_call.1} parent=5 // pred_fallthru
        _
      %p1133 = scmp.le.s32.totalorder 2, %s19
      // Predicated region
      $region89: #{tpu_custom_call.1} parent=5 // pred_check
        %p1134 = pneg %p1133
      $region90: #{tpu_custom_call.1} parent=5 // pred_check_branch
        %1136 = sbr.rel (%p1134) target = $region92
      $region91: #{tpu_custom_call.1} parent=5 // pred_region
        %s1137 = ssub.s32 %s19, 2
      $region92: #{tpu_custom_call.1} parent=5 // pred_fallthru
        _
    $region6: #{tpu_custom_call.1} parent=1 // loop_footer
      %s23 = sadd.s32 1, %s19
    $region7: #{tpu_custom_call.1} parent=1 // loop_footer_branch
      %18 = sbr.rel target = $region3
    $region8: #{tpu_custom_call.1} parent=1 // loop_exit
      _
    %1138 = vsyncpa [#allocation6], 1
    %s1139 = scalar_lea.sflag [#allocation6], 1
    %1140 = vsyncpa %s1139, 1
    %1141 = vsyncpa [#allocation9], 1
    %1142 = vsyncpa [#allocation7], 1
    %s1143 = scalar_lea.sflag [#allocation7], 1
    %1144 = vsyncpa %s1143, 1

</llo_original>
